<compile_context>
chip_gen: v7x
topology: tpu7x:2x2x1
jax: 0.10.0
libtpu: 0.0.40
codegen_flags: <defaults>
</compile_context>

<pallas_src>
import functools

import jax
import jax.numpy as jnp
import numpy as np
from jax.experimental import pallas as pl
from jax.experimental.pallas import tpu as pltpu

BATCHNORM_EPSILON = 1e-3  # params.BATCHNORM_EPSILON (TF-style default)
LANES = 128


def _round_up(x, m):
    return (x + m - 1) // m * m


def _same_padding(in_size, k, stride, dilation=1):
    """Replicates Conv2dSame.calc_same_padding + the odd-pad trick."""
    kernel_size = (k - 1) * dilation + 1
    out_size = (in_size + stride - 1) // stride
    pad = max(0, (out_size - 1) * stride + kernel_size - in_size)
    lo = pad // 2
    hi = pad - lo  # odd amount goes to the bottom/right (TF/timm SAME)
    return lo, hi, out_size


def _fold_bn(gamma, beta, mean, var):
    scale = gamma / jnp.sqrt(var + BATCHNORM_EPSILON)
    shift = beta - mean * scale
    return scale.astype(jnp.float32), shift.astype(jnp.float32)


def _pick_row_tile(ho, wp, wo, cpad, coutp, stride, kh,
                   budget_bytes=8 * 1024 * 1024):
    """Largest row tile (<= 8 rows, divides Ho) whose buffers fit the budget."""
    for cand in range(min(ho, 8), 0, -1):
        if ho % cand:
            continue
        halo_rows = (cand - 1) * stride + kh
        need = (2 * halo_rows * wp * cpad * 4      # halo double buffer (f32)
                + 2 * cand * wo * coutp * 4)       # pipelined output block (f32)
        if need <= budget_bytes:
            return cand
    return 1


# ---------------------------------------------------------------------------
# Pallas kernel: one (batch, row-tile) pair per grid step, fully fused
#   double-buffered halo DMA (HBM -> VMEM scratch, next tile prefetched)
#   depthwise conv taps on the VPU -> BN shift -> ReLU
#   pointwise 1x1 conv as a bf16 (TILE_H*Wo, Cp) @ (Cp, Coutp) MXU matmul
#   -> BN shift -> ReLU -> lane-dense output block
# ---------------------------------------------------------------------------
def _separable_conv_kernel(xpad_hbm, wdw_ref, bdw_ref, wpw_ref, bpw_ref,
                           out_ref, xbuf, dma_sem,
                           *, kh, kw, stride, tile_h, wo, halo_rows, n_tiles):
    b = pl.program_id(0)
    t = pl.program_id(1)
    slot = t % 2

    def start_fetch(tile_idx, slot_idx):
        row0 = pl.multiple_of(tile_idx * (tile_h * stride), tile_h * stride)
        pltpu.make_async_copy(
            xpad_hbm.at[b, pl.ds(row0, halo_rows), :, :],
            xbuf.at[slot_idx],
            dma_sem.at[slot_idx],
        ).start()

    # Prime the pipeline on the first row-tile of this image.
    @pl.when(t == 0)
    def _():
        start_fetch(0, 0)

    # Prefetch the next row-tile's halo while the current tile is computed.
    # (row-tile axis is "arbitrary" -> sequential per core, so t+1 is next.)
    @pl.when(t + 1 < n_tiles)
    def _():
        start_fetch(t + 1, 1 - slot)

    # Wait for the current tile's halo window (same size as every copy).
    pltpu.make_async_copy(
        xpad_hbm.at[b, pl.ds(0, halo_rows), :, :],   # size-matching dummy src
        xbuf.at[slot],
        dma_sem.at[slot],
    ).wait()

    x = xbuf[slot]                 # (halo_rows, wp, cpad) f32
    wdw = wdw_ref[...]             # (kh, kw, cpad) — BN scale already folded in
    c = x.shape[-1]

    # depthwise convolution: accumulate over the (static) kernel taps
    acc = jnp.zeros((tile_h, wo, c), jnp.float32)
    for i in range(kh):
        for j in range(kw):
            patch = jax.lax.slice(
                x,
                (i, j, 0),
                (i + (tile_h - 1) * stride + 1, j + (wo - 1) * stride + 1, c),
                (stride, stride, 1),
            )
            acc = acc + patch * wdw[i, j, :]

    # depthwise BN shift + ReLU (scale folded into wdw)
    y = jnp.maximum(acc + bdw_ref[...][0], 0.0)

    # pointwise 1x1 conv on the MXU (bf16 operands, f32 accumulation)
    z = jnp.dot(y.reshape(tile_h * wo, c).astype(jnp.bfloat16),
                wpw_ref[...],
                preferred_element_type=jnp.float32)
    z = jnp.maximum(z + bpw_ref[...], 0.0)   # pointwise BN shift + ReLU

    out_ref[...] = z.reshape(1, tile_h, wo, -1).astype(out_ref.dtype)


def separable_conv(x_nchw, w_dw, w_pw, bn1, bn2, kernel, stride):
    """x_nchw: (N, C, H, W) float32. Returns (N, Cout, Ho, Wo)."""
    x = jnp.transpose(x_nchw, (0, 2, 3, 1)).astype(jnp.float32)  # -> NHWC
    n, h, w, c = x.shape
    kh = kw = kernel
    cout = w_pw.shape[1]

    h_lo, h_hi, ho = _same_padding(h, kh, stride)
    w_lo, w_hi, wo = _same_padding(w, kw, stride)

    # lane-align channels (multiples of 128)
    cpad = _round_up(c, LANES)
    coutp = _round_up(cout, LANES)

    # fold BN scales into the conv weights; keep only the shifts for the kernel
    s1, b1 = _fold_bn(*bn1)
    s2, b2 = _fold_bn(*bn2)
    wdw = w_dw.astype(jnp.float32) * s1                     # (kh, kw, c)
    wpw = w_pw.astype(jnp.float32) * s2[None, :]            # (c, cout)

    wdw = jnp.pad(wdw, ((0, 0), (0, 0), (0, cpad - c)))
    b1p = jnp.pad(b1, (0, cpad - c)).reshape(1, cpad)
    wpw = jnp.pad(wpw, ((0, cpad - c), (0, coutp - cout))).astype(jnp.bfloat16)
    b2p = jnp.pad(b2, (0, coutp - cout)).reshape(1, coutp)

    # SAME spatial padding + channel padding of the activation.
    xpad = jnp.pad(x, ((0, 0), (h_lo, h_hi), (w_lo, w_hi), (0, cpad - c)))
    hp, wp = xpad.shape[1], xpad.shape[2]

    tile_h = _pick_row_tile(ho, wp, wo, cpad, coutp, stride, kh)
    n_tiles = ho // tile_h
    halo_rows = (tile_h - 1) * stride + kh   # padded rows needed per output tile

    kern = functools.partial(_separable_conv_kernel,
                             kh=kh, kw=kw, stride=stride,
                             tile_h=tile_h, wo=wo, halo_rows=halo_rows,
                             n_tiles=n_tiles)

    out = pl.pallas_call(
        kern,
        out_shape=jax.ShapeDtypeStruct((n, ho, wo, coutp), jnp.float32),
        grid=(n, n_tiles),
        in_specs=[
            pl.BlockSpec(memory_space=pl.ANY),                       # padded input (HBM)
            pl.BlockSpec((kh, kw, cpad), lambda b, t: (0, 0, 0)),    # dw weights (scale folded)
            pl.BlockSpec((1, cpad), lambda b, t: (0, 0)),            # dw BN shift
            pl.BlockSpec((cpad, coutp), lambda b, t: (0, 0)),        # pw weights bf16 (scale folded)
            pl.BlockSpec((1, coutp), lambda b, t: (0, 0)),           # pw BN shift
        ],
        out_specs=pl.BlockSpec((1, tile_h, wo, coutp), lambda b, t: (b, t, 0, 0)),
        scratch_shapes=[
            pltpu.VMEM((2, halo_rows, wp, cpad), jnp.float32),       # double-buffered halo window
            pltpu.SemaphoreType.DMA((2,)),                           # one DMA sem per slot
        ],
        compiler_params=pltpu.CompilerParams(
            # batch axis parallel (megacore); row-tile axis must stay sequential
            # ("arbitrary") because the halo prefetch targets tile t+1.
            dimension_semantics=("parallel", "arbitrary"),
            vmem_limit_bytes=32 * 1024 * 1024,
        ),
    )(xpad, wdw, b1p, wpw, b2p)

    out = out[:, :, :, :cout]                 # drop lane padding
    return jnp.transpose(out, (0, 3, 1, 2))   # back to NCHW


# ---------------------------------------------------------------------------
# Pure-JAX f32 reference (same math, vectorized over batch) for validation
# ---------------------------------------------------------------------------
def separable_conv_ref(x_nchw, w_dw, w_pw, bn1, bn2, kernel, stride):
    x = jnp.transpose(x_nchw, (0, 2, 3, 1)).astype(jnp.float32)
    n, h, w, c = x.shape
    kh = kw = kernel
    h_lo, h_hi, ho = _same_padding(h, kh, stride)
    w_lo, w_hi, wo = _same_padding(w, kw, stride)
    xpad = jnp.pad(x, ((0, 0), (h_lo, h_hi), (w_lo, w_hi), (0, 0)))

    acc = jnp.zeros((n, ho, wo, c), jnp.float32)
    for i in range(kh):
        for j in range(kw):
            patch = xpad[:, i:i + (ho - 1) * stride + 1:stride,
                            j:j + (wo - 1) * stride + 1:stride, :]
            acc = acc + patch * w_dw[i, j, :]

    s1, b1 = _fold_bn(*bn1)
    s2, b2 = _fold_bn(*bn2)
    y = jnp.maximum(acc * s1 + b1, 0.0)
    z = jnp.maximum(jnp.einsum("nhwc,co->nhwo", y, w_pw) * s2 + b2, 0.0)
    return jnp.transpose(z, (0, 3, 1, 2))


if __name__ == "__main__":
    key = jax.random.PRNGKey(0)
    keys = jax.random.split(key, 7)

    N, C, H, W = 2, 4, 16, 16
    COUT, KERNEL, STRIDE = 8, 3, 1

    x = jax.random.normal(keys[0], (N, C, H, W), jnp.float32)
    # PyTorch depthwise weight (C, 1, K, K) stored here as (K, K, C)
    w_dw = 0.1 * jax.random.normal(keys[1], (KERNEL, KERNEL, C), jnp.float32)
    # PyTorch pointwise weight (COUT, C, 1, 1) stored here as (C, COUT)
    w_pw = 0.1 * jax.random.normal(keys[2], (C, COUT), jnp.float32)

    # BatchNorm params: (gamma, beta, running_mean, running_var)
    bn1 = (1.0 + 0.1 * jax.random.normal(keys[3], (C,), jnp.float32),
           0.1 * jax.random.normal(keys[4], (C,), jnp.float32),
           jnp.zeros((C,), jnp.float32), jnp.ones((C,), jnp.float32))
    bn2 = (1.0 + 0.1 * jax.random.normal(keys[5], (COUT,), jnp.float32),
           0.1 * jax.random.normal(keys[6], (COUT,), jnp.float32),
           jnp.zeros((COUT,), jnp.float32), jnp.ones((COUT,), jnp.float32))

    out = separable_conv(x, w_dw, w_pw, bn1, bn2, KERNEL, STRIDE)
    jax.block_until_ready(out)

    ref = separable_conv_ref(x, w_dw, w_pw, bn1, bn2, KERNEL, STRIDE)
    assert out.shape == (N, COUT, H, W), out.shape
    # bf16 MXU operands -> looser tolerance than the pure-f32 reference
    np.testing.assert_allclose(np.asarray(out), np.asarray(ref),
                               rtol=1e-2, atol=1e-2)
    print("KERNEL_OK")
</pallas_src>

<mosaic_0001>
module attributes {stable_mosaic.version = 11 : i64} {
  func.func @_separable_conv_kernel(%arg0: i32, %arg1: i32, %arg2: memref<2x18x18x128xf32, #tpu.memory_space<any>>, %arg3: memref<3x3x128xf32, #tpu.memory_space<vmem>>, %arg4: memref<1x128xf32, #tpu.memory_space<vmem>>, %arg5: memref<128x128xbf16, #tpu.memory_space<vmem>>, %arg6: memref<1x128xf32, #tpu.memory_space<vmem>>, %arg7: memref<1x8x16x128xf32, #tpu.memory_space<vmem>>, %arg8: memref<2x10x18x128xf32, #tpu.memory_space<vmem>>, %arg9: memref<2x!tpu.dma_semaphore, #tpu.memory_space<semaphore_mem>>) attributes {dimension_semantics = [#tpu.dimension_semantics<parallel>, #tpu.dimension_semantics<arbitrary>], iteration_bounds = array<i64: 2, 2>, scalar_prefetch = 0 : i64, scratch_operands = 2 : i64, tpu.core_type = #tpu.core_type<tc>, window_params = [{}, {pipeline_mode = #tpu.pipeline_mode<synchronous>, transform_indices = @transform_1, window_bounds = array<i64: 3, 3, 128>}, {pipeline_mode = #tpu.pipeline_mode<synchronous>, transform_indices = @transform_2, window_bounds = array<i64: 1, 128>}, {pipeline_mode = #tpu.pipeline_mode<synchronous>, transform_indices = @transform_3, window_bounds = array<i64: 128, 128>}, {pipeline_mode = #tpu.pipeline_mode<synchronous>, transform_indices = @transform_4, window_bounds = array<i64: 1, 128>}, {transform_indices = @transform_5, window_bounds = array<i64: 1, 8, 16, 128>}]} {
    %c2_i32 = arith.constant 2 : i32
    %c0_i32 = arith.constant 0 : i32
    %0 = arith.cmpi eq, %c2_i32, %c0_i32 : i32
    %c1_i32 = arith.constant 1 : i32
    %1 = arith.select %0, %c1_i32, %c2_i32 : i32
    %2 = arith.remsi %arg1, %1 : i32
    %c0_i32_0 = arith.constant 0 : i32
    %3 = arith.cmpi ne, %2, %c0_i32_0 : i32
    %c0_i32_1 = arith.constant 0 : i32
    %4 = arith.cmpi slt, %2, %c0_i32_1 : i32
    %c0_i32_2 = arith.constant 0 : i32
    %5 = arith.cmpi slt, %1, %c0_i32_2 : i32
    %6 = arith.xori %4, %5 : i1
    %7 = arith.andi %6, %3 : i1
    %8 = arith.addi %2, %1 : i32
    %9 = arith.select %7, %8, %2 : i32
    %c0_i32_3 = arith.constant 0 : i32
    %10 = arith.cmpi eq, %arg1, %c0_i32_3 : i32
    %11 = arith.extui %10 : i1 to i32
    %c0_i32_4 = arith.constant 0 : i32
    %12 = arith.cmpi ne, %11, %c0_i32_4 : i32
    scf.if %12 {
      %c0_i32_32 = arith.constant 0 : i32
      %109 = tpu.assume_multiple %c0_i32_32, 8 : i32
      %c0_i32_33 = arith.constant 0 : i32
      %c0_i32_34 = arith.constant 0 : i32
      %c0_i32_35 = arith.constant 0 : i32
      %c0_i32_36 = arith.constant 0 : i32
      %110 = tpu.memref_slice %arg2[%arg0, %109, %c0_i32_35, %c0_i32_36] : memref<2x18x18x128xf32, #tpu.memory_space<any>> -> memref<1x10x18x128xf32, #tpu.memory_space<any>>
      %111 = tpu.memref_squeeze %110 : memref<1x10x18x128xf32, #tpu.memory_space<any>> -> memref<10x18x128xf32, #tpu.memory_space<any>>
      %c0_i32_37 = arith.constant 0 : i32
      %c0_i32_38 = arith.constant 0 : i32
      %c0_i32_39 = arith.constant 0 : i32
      %112 = tpu.memref_slice %arg8[%c0_i32_33, %c0_i32_37, %c0_i32_38, %c0_i32_39] : memref<2x10x18x128xf32, #tpu.memory_space<vmem>> -> memref<1x10x18x128xf32, #tpu.memory_space<vmem>>
      %113 = tpu.memref_squeeze %112 : memref<1x10x18x128xf32, #tpu.memory_space<vmem>> -> memref<10x18x128xf32, #tpu.memory_space<vmem>>
      %114 = tpu.memref_slice %arg9[%c0_i32_34] : memref<2x!tpu.dma_semaphore, #tpu.memory_space<semaphore_mem>> -> memref<1x!tpu.dma_semaphore, #tpu.memory_space<semaphore_mem>>
      %115 = tpu.memref_squeeze %114 : memref<1x!tpu.dma_semaphore, #tpu.memory_space<semaphore_mem>> -> memref<!tpu.dma_semaphore, #tpu.memory_space<semaphore_mem>>
      tpu.enqueue_dma source(%111 : memref<10x18x128xf32, #tpu.memory_space<any>>) target(%113 : memref<10x18x128xf32, #tpu.memory_space<vmem>>) target_semaphore(%115 : memref<!tpu.dma_semaphore, #tpu.memory_space<semaphore_mem>>)
    } else {
    }
    %c1_i32_5 = arith.constant 1 : i32
    %13 = arith.addi %arg1, %c1_i32_5 : i32
    %c2_i32_6 = arith.constant 2 : i32
    %14 = arith.cmpi slt, %13, %c2_i32_6 : i32
    %15 = arith.extui %14 : i1 to i32
    %c0_i32_7 = arith.constant 0 : i32
    %16 = arith.cmpi ne, %15, %c0_i32_7 : i32
    scf.if %16 {
      %c1_i32_32 = arith.constant 1 : i32
      %109 = arith.addi %arg1, %c1_i32_32 : i32
      %c1_i32_33 = arith.constant 1 : i32
      %110 = arith.subi %c1_i32_33, %9 : i32
      %c8_i32 = arith.constant 8 : i32
      %111 = arith.muli %109, %c8_i32 : i32
      %112 = tpu.assume_multiple %111, 8 : i32
      %c0_i32_34 = arith.constant 0 : i32
      %c0_i32_35 = arith.constant 0 : i32
      %113 = tpu.memref_slice %arg2[%arg0, %112, %c0_i32_34, %c0_i32_35] : memref<2x18x18x128xf32, #tpu.memory_space<any>> -> memref<1x10x18x128xf32, #tpu.memory_space<any>>
      %114 = tpu.memref_squeeze %113 : memref<1x10x18x128xf32, #tpu.memory_space<any>> -> memref<10x18x128xf32, #tpu.memory_space<any>>
      %c0_i32_36 = arith.constant 0 : i32
      %c0_i32_37 = arith.constant 0 : i32
      %c0_i32_38 = arith.constant 0 : i32
      %115 = tpu.memref_slice %arg8[%110, %c0_i32_36, %c0_i32_37, %c0_i32_38] : memref<2x10x18x128xf32, #tpu.memory_space<vmem>> -> memref<1x10x18x128xf32, #tpu.memory_space<vmem>>
      %116 = tpu.memref_squeeze %115 : memref<1x10x18x128xf32, #tpu.memory_space<vmem>> -> memref<10x18x128xf32, #tpu.memory_space<vmem>>
      %117 = tpu.memref_slice %arg9[%110] : memref<2x!tpu.dma_semaphore, #tpu.memory_space<semaphore_mem>> -> memref<1x!tpu.dma_semaphore, #tpu.memory_space<semaphore_mem>>
      %118 = tpu.memref_squeeze %117 : memref<1x!tpu.dma_semaphore, #tpu.memory_space<semaphore_mem>> -> memref<!tpu.dma_semaphore, #tpu.memory_space<semaphore_mem>>
      tpu.enqueue_dma source(%114 : memref<10x18x128xf32, #tpu.memory_space<any>>) target(%116 : memref<10x18x128xf32, #tpu.memory_space<vmem>>) target_semaphore(%118 : memref<!tpu.dma_semaphore, #tpu.memory_space<semaphore_mem>>)
    } else {
    }
    %c0_i32_8 = arith.constant 0 : i32
    %c0_i32_9 = arith.constant 0 : i32
    %c0_i32_10 = arith.constant 0 : i32
    %17 = tpu.memref_slice %arg2[%arg0, %c0_i32_8, %c0_i32_9, %c0_i32_10] : memref<2x18x18x128xf32, #tpu.memory_space<any>> -> memref<1x10x18x128xf32, #tpu.memory_space<any>>
    %18 = tpu.memref_squeeze %17 : memref<1x10x18x128xf32, #tpu.memory_space<any>> -> memref<10x18x128xf32, #tpu.memory_space<any>>
    %c0_i32_11 = arith.constant 0 : i32
    %c0_i32_12 = arith.constant 0 : i32
    %c0_i32_13 = arith.constant 0 : i32
    %19 = tpu.memref_slice %arg8[%9, %c0_i32_11, %c0_i32_12, %c0_i32_13] : memref<2x10x18x128xf32, #tpu.memory_space<vmem>> -> memref<1x10x18x128xf32, #tpu.memory_space<vmem>>
    %20 = tpu.memref_squeeze %19 : memref<1x10x18x128xf32, #tpu.memory_space<vmem>> -> memref<10x18x128xf32, #tpu.memory_space<vmem>>
    %21 = tpu.memref_slice %arg9[%9] : memref<2x!tpu.dma_semaphore, #tpu.memory_space<semaphore_mem>> -> memref<1x!tpu.dma_semaphore, #tpu.memory_space<semaphore_mem>>
    %22 = tpu.memref_squeeze %21 : memref<1x!tpu.dma_semaphore, #tpu.memory_space<semaphore_mem>> -> memref<!tpu.dma_semaphore, #tpu.memory_space<semaphore_mem>>
    tpu.wait_dma2 semaphore(%22 : memref<!tpu.dma_semaphore, #tpu.memory_space<semaphore_mem>>) src(%18 : memref<10x18x128xf32, #tpu.memory_space<any>>) dst(%20 : memref<10x18x128xf32, #tpu.memory_space<vmem>>)
    %23 = arith.index_cast %9 : i32 to index
    %c0 = arith.constant 0 : index
    %c0_14 = arith.constant 0 : index
    %c0_15 = arith.constant 0 : index
    %24 = vector.load %arg8[%23, %c0, %c0_14, %c0_15] : memref<2x10x18x128xf32, #tpu.memory_space<vmem>>, vector<1x10x18x128xf32>
    %25 = vector.shape_cast %24 : vector<1x10x18x128xf32> to vector<10x18x128xf32>
    %c0_16 = arith.constant 0 : index
    %c0_17 = arith.constant 0 : index
    %c0_18 = arith.constant 0 : index
    %26 = vector.load %arg3[%c0_16, %c0_17, %c0_18] : memref<3x3x128xf32, #tpu.memory_space<vmem>>, vector<3x3x128xf32>
    %cst = arith.constant 0.000000e+00 : f32
    %27 = vector.broadcast %cst : f32 to vector<8x16x128xf32>
    %28 = vector.extract_strided_slice %25 {offsets = [0, 0, 0], sizes = [8, 16, 128], strides = [1, 1, 1]} : vector<10x18x128xf32> to vector<8x16x128xf32>
    %29 = vector.extract_strided_slice %26 {offsets = [0, 0, 0], sizes = [1, 1, 128], strides = [1, 1, 1]} : vector<3x3x128xf32> to vector<1x1x128xf32>
    %30 = vector.shape_cast %29 : vector<1x1x128xf32> to vector<128xf32>
    %31 = vector.shape_cast %30 : vector<128xf32> to vector<1x1x128xf32>
    %32 = vector.broadcast %31 : vector<1x1x128xf32> to vector<8x16x128xf32>
    %33 = arith.mulf %28, %32 : vector<8x16x128xf32>
    %34 = arith.addf %27, %33 : vector<8x16x128xf32>
    %35 = vector.extract_strided_slice %25 {offsets = [0, 1, 0], sizes = [8, 16, 128], strides = [1, 1, 1]} : vector<10x18x128xf32> to vector<8x16x128xf32>
    %36 = vector.extract_strided_slice %26 {offsets = [0, 1, 0], sizes = [1, 1, 128], strides = [1, 1, 1]} : vector<3x3x128xf32> to vector<1x1x128xf32>
    %37 = vector.shape_cast %36 : vector<1x1x128xf32> to vector<128xf32>
    %38 = vector.shape_cast %37 : vector<128xf32> to vector<1x1x128xf32>
    %39 = vector.broadcast %38 : vector<1x1x128xf32> to vector<8x16x128xf32>
    %40 = arith.mulf %35, %39 : vector<8x16x128xf32>
    %41 = arith.addf %34, %40 : vector<8x16x128xf32>
    %42 = vector.extract_strided_slice %25 {offsets = [0, 2, 0], sizes = [8, 16, 128], strides = [1, 1, 1]} : vector<10x18x128xf32> to vector<8x16x128xf32>
    %43 = vector.extract_strided_slice %26 {offsets = [0, 2, 0], sizes = [1, 1, 128], strides = [1, 1, 1]} : vector<3x3x128xf32> to vector<1x1x128xf32>
    %44 = vector.shape_cast %43 : vector<1x1x128xf32> to vector<128xf32>
    %45 = vector.shape_cast %44 : vector<128xf32> to vector<1x1x128xf32>
    %46 = vector.broadcast %45 : vector<1x1x128xf32> to vector<8x16x128xf32>
    %47 = arith.mulf %42, %46 : vector<8x16x128xf32>
    %48 = arith.addf %41, %47 : vector<8x16x128xf32>
    %49 = vector.extract_strided_slice %25 {offsets = [1, 0, 0], sizes = [8, 16, 128], strides = [1, 1, 1]} : vector<10x18x128xf32> to vector<8x16x128xf32>
    %50 = vector.extract_strided_slice %26 {offsets = [1, 0, 0], sizes = [1, 1, 128], strides = [1, 1, 1]} : vector<3x3x128xf32> to vector<1x1x128xf32>
    %51 = vector.shape_cast %50 : vector<1x1x128xf32> to vector<128xf32>
    %52 = vector.shape_cast %51 : vector<128xf32> to vector<1x1x128xf32>
    %53 = vector.broadcast %52 : vector<1x1x128xf32> to vector<8x16x128xf32>
    %54 = arith.mulf %49, %53 : vector<8x16x128xf32>
    %55 = arith.addf %48, %54 : vector<8x16x128xf32>
    %56 = vector.extract_strided_slice %25 {offsets = [1, 1, 0], sizes = [8, 16, 128], strides = [1, 1, 1]} : vector<10x18x128xf32> to vector<8x16x128xf32>
    %57 = vector.extract_strided_slice %26 {offsets = [1, 1, 0], sizes = [1, 1, 128], strides = [1, 1, 1]} : vector<3x3x128xf32> to vector<1x1x128xf32>
    %58 = vector.shape_cast %57 : vector<1x1x128xf32> to vector<128xf32>
    %59 = vector.shape_cast %58 : vector<128xf32> to vector<1x1x128xf32>
    %60 = vector.broadcast %59 : vector<1x1x128xf32> to vector<8x16x128xf32>
    %61 = arith.mulf %56, %60 : vector<8x16x128xf32>
    %62 = arith.addf %55, %61 : vector<8x16x128xf32>
    %63 = vector.extract_strided_slice %25 {offsets = [1, 2, 0], sizes = [8, 16, 128], strides = [1, 1, 1]} : vector<10x18x128xf32> to vector<8x16x128xf32>
    %64 = vector.extract_strided_slice %26 {offsets = [1, 2, 0], sizes = [1, 1, 128], strides = [1, 1, 1]} : vector<3x3x128xf32> to vector<1x1x128xf32>
    %65 = vector.shape_cast %64 : vector<1x1x128xf32> to vector<128xf32>
    %66 = vector.shape_cast %65 : vector<128xf32> to vector<1x1x128xf32>
    %67 = vector.broadcast %66 : vector<1x1x128xf32> to vector<8x16x128xf32>
    %68 = arith.mulf %63, %67 : vector<8x16x128xf32>
    %69 = arith.addf %62, %68 : vector<8x16x128xf32>
    %70 = vector.extract_strided_slice %25 {offsets = [2, 0, 0], sizes = [8, 16, 128], strides = [1, 1, 1]} : vector<10x18x128xf32> to vector<8x16x128xf32>
    %71 = vector.extract_strided_slice %26 {offsets = [2, 0, 0], sizes = [1, 1, 128], strides = [1, 1, 1]} : vector<3x3x128xf32> to vector<1x1x128xf32>
    %72 = vector.shape_cast %71 : vector<1x1x128xf32> to vector<128xf32>
    %73 = vector.shape_cast %72 : vector<128xf32> to vector<1x1x128xf32>
    %74 = vector.broadcast %73 : vector<1x1x128xf32> to vector<8x16x128xf32>
    %75 = arith.mulf %70, %74 : vector<8x16x128xf32>
    %76 = arith.addf %69, %75 : vector<8x16x128xf32>
    %77 = vector.extract_strided_slice %25 {offsets = [2, 1, 0], sizes = [8, 16, 128], strides = [1, 1, 1]} : vector<10x18x128xf32> to vector<8x16x128xf32>
    %78 = vector.extract_strided_slice %26 {offsets = [2, 1, 0], sizes = [1, 1, 128], strides = [1, 1, 1]} : vector<3x3x128xf32> to vector<1x1x128xf32>
    %79 = vector.shape_cast %78 : vector<1x1x128xf32> to vector<128xf32>
    %80 = vector.shape_cast %79 : vector<128xf32> to vector<1x1x128xf32>
    %81 = vector.broadcast %80 : vector<1x1x128xf32> to vector<8x16x128xf32>
    %82 = arith.mulf %77, %81 : vector<8x16x128xf32>
    %83 = arith.addf %76, %82 : vector<8x16x128xf32>
    %84 = vector.extract_strided_slice %25 {offsets = [2, 2, 0], sizes = [8, 16, 128], strides = [1, 1, 1]} : vector<10x18x128xf32> to vector<8x16x128xf32>
    %85 = vector.extract_strided_slice %26 {offsets = [2, 2, 0], sizes = [1, 1, 128], strides = [1, 1, 1]} : vector<3x3x128xf32> to vector<1x1x128xf32>
    %86 = vector.shape_cast %85 : vector<1x1x128xf32> to vector<128xf32>
    %87 = vector.shape_cast %86 : vector<128xf32> to vector<1x1x128xf32>
    %88 = vector.broadcast %87 : vector<1x1x128xf32> to vector<8x16x128xf32>
    %89 = arith.mulf %84, %88 : vector<8x16x128xf32>
    %90 = arith.addf %83, %89 : vector<8x16x128xf32>
    %c0_19 = arith.constant 0 : index
    %c0_20 = arith.constant 0 : index
    %91 = vector.load %arg4[%c0_19, %c0_20] : memref<1x128xf32, #tpu.memory_space<vmem>>, vector<1x128xf32>
    %92 = vector.shape_cast %91 : vector<1x128xf32> to vector<128xf32>
    %93 = vector.shape_cast %92 : vector<128xf32> to vector<1x1x128xf32>
    %94 = vector.broadcast %93 : vector<1x1x128xf32> to vector<8x16x128xf32>
    %95 = arith.addf %90, %94 : vector<8x16x128xf32>
    %cst_21 = arith.constant 0.000000e+00 : f32
    %96 = vector.broadcast %cst_21 : f32 to vector<8x16x128xf32>
    %97 = arith.maximumf %95, %96 : vector<8x16x128xf32>
    %98 = vector.shape_cast %97 : vector<8x16x128xf32> to vector<128x128xf32>
    %99 = arith.truncf %98 : vector<128x128xf32> to vector<128x128xbf16>
    %c0_22 = arith.constant 0 : index
    %c0_23 = arith.constant 0 : index
    %100 = vector.load %arg5[%c0_22, %c0_23] : memref<128x128xbf16, #tpu.memory_space<vmem>>, vector<128x128xbf16>
    %cst_24 = arith.constant dense<0.000000e+00> : vector<128x128xf32>
    %101 = tpu.matmul %99, %100, %cst_24 {dimension_numbers = #tpu.dot_dimension_numbers<[1], [0], [0], [1], [0, 0, 1, 1], [], []>} : vector<128x128xbf16>, vector<128x128xbf16>, vector<128x128xf32> -> vector<128x128xf32>
    %c0_25 = arith.constant 0 : index
    %c0_26 = arith.constant 0 : index
    %102 = vector.load %arg6[%c0_25, %c0_26] : memref<1x128xf32, #tpu.memory_space<vmem>>, vector<1x128xf32>
    %103 = vector.broadcast %102 : vector<1x128xf32> to vector<128x128xf32>
    %104 = arith.addf %101, %103 : vector<128x128xf32>
    %cst_27 = arith.constant 0.000000e+00 : f32
    %105 = vector.broadcast %cst_27 : f32 to vector<128x128xf32>
    %106 = arith.maximumf %104, %105 : vector<128x128xf32>
    %107 = vector.shape_cast %106 : vector<128x128xf32> to vector<1x8x16x128xf32>
    %c0_28 = arith.constant 0 : index
    %c0_29 = arith.constant 0 : index
    %c0_30 = arith.constant 0 : index
    %c0_31 = arith.constant 0 : index
    %108 = vector.load %arg7[%c0_28, %c0_29, %c0_30, %c0_31] : memref<1x8x16x128xf32, #tpu.memory_space<vmem>>, vector<1x8x16x128xf32>
    tpu.vector_store %arg7[%c0_28, %c0_29, %c0_30, %c0_31], %107 {strides = array<i32>} : memref<1x8x16x128xf32, #tpu.memory_space<vmem>>, vector<1x8x16x128xf32>,
    return
  }
  func.func @transform_1(%arg0: i32, %arg1: i32) -> (i32, i32, i32) {
    %c0_i32 = arith.constant 0 : i32
    %c0_i32_0 = arith.constant 0 : i32
    %c0_i32_1 = arith.constant 0 : i32
    %c0_i32_2 = arith.constant 0 : i32
    return %c0_i32, %c0_i32_0, %c0_i32_1 : i32, i32, i32
  }
  func.func @transform_2(%arg0: i32, %arg1: i32) -> (i32, i32) {
    %c0_i32 = arith.constant 0 : i32
    %c0_i32_0 = arith.constant 0 : i32
    %c0_i32_1 = arith.constant 0 : i32
    return %c0_i32, %c0_i32_0 : i32, i32
  }
  func.func @transform_3(%arg0: i32, %arg1: i32) -> (i32, i32) {
    %c0_i32 = arith.constant 0 : i32
    %c0_i32_0 = arith.constant 0 : i32
    %c0_i32_1 = arith.constant 0 : i32
    return %c0_i32, %c0_i32_0 : i32, i32
  }
  func.func @transform_4(%arg0: i32, %arg1: i32) -> (i32, i32) {
    %c0_i32 = arith.constant 0 : i32
    %c0_i32_0 = arith.constant 0 : i32
    %c0_i32_1 = arith.constant 0 : i32
    return %c0_i32, %c0_i32_0 : i32, i32
  }
  func.func @transform_5(%arg0: i32, %arg1: i32) -> (i32, i32, i32, i32) {
    %c0_i32 = arith.constant 0 : i32
    %c0_i32_0 = arith.constant 0 : i32
    %c0_i32_1 = arith.constant 0 : i32
    return %arg0, %arg1, %c0_i32, %c0_i32_0 : i32, i32, i32, i32
  }
}

</mosaic_0001>

<llo_original>
// kernel: tpu_custom_call.1
$region0: #{tpu_custom_call.1}
  #allocation0 [shape = 'u32[]', space=smem, size = 0x4, offset = 0x4, fixed_abs, tag = 'smem constant byte address 0x4 - core index']
  #allocation1 [shape = 'u32[144,128]{1,0:T(1,128)}', space=vmem, size = 0x12000, scoped, tag = 'internal scratch']
  #allocation2 [shape = 'f32[2,10,18,128]{3,2,1,0:T(8,128)}', space=vmem, size = 0x3c000, scoped, tag = 'scratch operand']
  #allocation3 [shape = 's32[2]{0}', space=sflag, size = 0x8, scoped, tag = 'scratch operand']
  #allocation6 [shape = 's32[]', space=sflag, size = 0x4, offset = 0, fixed_abs, tag = 'sflag constant byte address 0x0 - dummy sync flag']
  #allocation7 [shape = 's32[]', space=sflag, size = 0x4, offset = 0, fixed_abs, tag = 'sflag constant byte address 0x0 - dummy sync flag']
  %s0 = inlined_call_operand.vmem [shape: f32[2,18,18,128], index: 0, kind: input, shape index: {}]
  %s1 = inlined_call_operand.vmem [shape: f32[3,3,128], index: 1, kind: input, shape index: {}]
  %s2 = inlined_call_operand.vmem [shape: f32[1,128], index: 2, kind: input, shape index: {}]
  %s3 = inlined_call_operand.vmem [shape: bf16[128,128], index: 3, kind: input, shape index: {}]
  %s4 = inlined_call_operand.vmem [shape: f32[1,128], index: 4, kind: input, shape index: {}]
  %s5 = inlined_call_operand.hbm [shape: f32[2,16,16,128], index: 5, kind: output, shape index: {}]
  %s6 = sld [smem:[#allocation0]]
  $region131: #{tpu_custom_call.1} parent=0
    _
  %s8 = ssub.s32 1, %s6
  %s9 = scalar_select 0, %s8, %s6
  $region1: #{tpu_custom_call.1} parent=0
    #allocation4 [shape = 'u8[131072]{0}', space=vmem, size = 0x20000, scoped, tag = 'output window, operand 0']
    #allocation5 [shape = 's32[2]{0}', space=sflag, size = 0x8, scoped, tag = 'scoped memory for tpu_custom_call.1']
    %10 = vsyncpa [#allocation5], 0
    %s11 = scalar_lea.sflag [#allocation5], 1
    %12 = vsyncpa %s11, 0
    loop: start=0, step=1, limit=6
    $region2: #{tpu_custom_call.1} parent=1 // loop_pre_header
      _
    $region3: #{tpu_custom_call.1} parent=1 // loop_header
      %s14 = sphi 0, %s18
      %p15 = scmp.ge.s32.totalorder %s14, 6
      %s21 = sphi 0, %s33
      %s22 = sphi 0, %s29
      %s23 = sphi 0, %s21
      %s24 = sphi 0, %s22
      %s25 = sphi 0, %s23
      %s26 = sphi 0, %s24
      %s34 = sphi 0, %s34
      %s36 = sphi 0, %s34
      %s37 = sphi 0, %s36
      %s51 = sphi 0, %s37
      %s55 = sphi 0, %s55
      %s57 = sphi 0, %s55
      %s58 = sphi 0, %s57
      %s72 = sphi 0, %s58
      %s76 = sphi 0, %s76
      %s78 = sphi 0, %s76
      %s79 = sphi 0, %s78
      %s93 = sphi 0, %s79
      %s97 = sphi 0, %s97
      %s99 = sphi 0, %s97
      %s100 = sphi 0, %s99
      %s114 = sphi 0, %s100
      %s122 = sphi 0, %s124
      %s125 = sphi 0, %s122
      %s126 = sphi 0, %s125
      %s142 = sphi 0, %s126
    $region4: #{tpu_custom_call.1} parent=1 // loop_header_branch
      %17 = sbr.rel (%p15) target = $region8
    $region5: #{tpu_custom_call.1} parent=1 // loop_body
      %s19 = ssub.s32 %s14, 1
      %s20 = ssub.s32 %s14, 2
      %s27 = sadd.s32 1, %s22
      %p28 = scmp.ge.s32.totalorder %s27, 2
      %s29 = scalar_select %p28, 0, %s27
      %s30 = sadd.s32 1, %s21
      %s31 = scalar_select %p28, %s30, %s21
      %p32 = scmp.ge.s32.totalorder %s31, 2
      %s33 = scalar_select %p32, 0, %s31
      %s35 = sadd.s32 %s34, 1
      %p38 = scmp.eq.s32.totalorder %s14, 3
      %p39 = scmp.ne.s32.totalorder %s34, %s36
      %p40 = scmp.eq.s32.totalorder %s14, 0
      %p41 = por %p39, %p40
      %p42 = scmp.ne.s32.totalorder %s34, %s36
      %p43 = scmp.eq.s32.totalorder %s19, 3
      %p44 = por %p42, %p43
      %p45 = scmp.ne.s32.totalorder %s36, %s37
      %p46 = scmp.eq.s32.totalorder %s19, 0
      %p47 = por %p45, %p46
      %p48 = scmp.ne.s32.totalorder %s36, %s37
      %p49 = scmp.eq.s32.totalorder %s20, 3
      %p50 = por %p48, %p49
      %p52 = scmp.ne.s32.totalorder %s37, %s51
      %p53 = scmp.eq.s32.totalorder %s20, 0
      %p54 = por %p52, %p53
      %s56 = sadd.s32 %s55, 1
      %p59 = scmp.eq.s32.totalorder %s14, 3
      %p60 = scmp.ne.s32.totalorder %s55, %s57
      %p61 = scmp.eq.s32.totalorder %s14, 0
      %p62 = por %p60, %p61
      %p63 = scmp.ne.s32.totalorder %s55, %s57
      %p64 = scmp.eq.s32.totalorder %s19, 3
      %p65 = por %p63, %p64
      %p66 = scmp.ne.s32.totalorder %s57, %s58
      %p67 = scmp.eq.s32.totalorder %s19, 0
      %p68 = por %p66, %p67
      %p69 = scmp.ne.s32.totalorder %s57, %s58
      %p70 = scmp.eq.s32.totalorder %s20, 3
      %p71 = por %p69, %p70
      %p73 = scmp.ne.s32.totalorder %s58, %s72
      %p74 = scmp.eq.s32.totalorder %s20, 0
      %p75 = por %p73, %p74
      %s77 = sadd.s32 %s76, 1
      %p80 = scmp.eq.s32.totalorder %s14, 3
      %p81 = scmp.ne.s32.totalorder %s76, %s78
      %p82 = scmp.eq.s32.totalorder %s14, 0
      %p83 = por %p81, %p82
      %p84 = scmp.ne.s32.totalorder %s76, %s78
      %p85 = scmp.eq.s32.totalorder %s19, 3
      %p86 = por %p84, %p85
      %p87 = scmp.ne.s32.totalorder %s78, %s79
      %p88 = scmp.eq.s32.totalorder %s19, 0
      %p89 = por %p87, %p88
      %p90 = scmp.ne.s32.totalorder %s78, %s79
      %p91 = scmp.eq.s32.totalorder %s20, 3
      %p92 = por %p90, %p91
      %p94 = scmp.ne.s32.totalorder %s79, %s93
      %p95 = scmp.eq.s32.totalorder %s20, 0
      %p96 = por %p94, %p95
      %s98 = sadd.s32 %s97, 1
      %p101 = scmp.eq.s32.totalorder %s14, 3
      %p102 = scmp.ne.s32.totalorder %s97, %s99
      %p103 = scmp.eq.s32.totalorder %s14, 0
      %p104 = por %p102, %p103
      %p105 = scmp.ne.s32.totalorder %s97, %s99
      %p106 = scmp.eq.s32.totalorder %s19, 3
      %p107 = por %p105, %p106
      %p108 = scmp.ne.s32.totalorder %s99, %s100
      %p109 = scmp.eq.s32.totalorder %s19, 0
      %p110 = por %p108, %p109
      %p111 = scmp.ne.s32.totalorder %s99, %s100
      %p112 = scmp.eq.s32.totalorder %s20, 3
      %p113 = por %p111, %p112
      %p115 = scmp.ne.s32.totalorder %s100, %s114
      %p116 = scmp.eq.s32.totalorder %s20, 0
      %p117 = por %p115, %p116
      %s118 = ssub.s32 %s21, %s33
      %s119 = ssub.s32 %s22, %s29
      %s120 = sor.u32 %s118, %s119
      %p121 = scmp.eq.s32.totalorder %s120, 0
      %s123 = sadd.s32 %s122, 1
      %s124 = scalar_select %p121, %s122, %s123
      %p127 = pneg %p121
      %p128 = scmp.eq.s32.totalorder %s14, 3
      %p129 = por %p127, %p128
      %p130 = scmp.ne.s32.totalorder %s122, %s125
      %p131 = scmp.eq.s32.totalorder %s14, 0
      %p132 = por %p130, %p131
      %p133 = scmp.ne.s32.totalorder %s122, %s125
      %p134 = scmp.eq.s32.totalorder %s19, 3
      %p135 = por %p133, %p134
      %p136 = scmp.ne.s32.totalorder %s125, %s126
      %p137 = scmp.eq.s32.totalorder %s19, 0
      %p138 = por %p136, %p137
      %p139 = scmp.ne.s32.totalorder %s125, %s126
      %p140 = scmp.eq.s32.totalorder %s20, 3
      %p141 = por %p139, %p140
      %p143 = scmp.ne.s32.totalorder %s126, %s142
      %p144 = scmp.eq.s32.totalorder %s20, 0
      %p145 = por %p143, %p144
      %p146 = scmp.le.s32.totalorder 1, %s14
      %p147 = scmp.lt.s32.totalorder %s14, 5
      %p148 = pnand %p146, %p147
      %p149 = pneg %p148
      // Predicated region
      $region9: #{tpu_custom_call.1} parent=5 // pred_check
        _
      $region10: #{tpu_custom_call.1} parent=5 // pred_check_branch
        %151 = sbr.rel (%p148) target = $region12
      $region11: #{tpu_custom_call.1} parent=5 // pred_region
        %s152 = ssub.s32 %s14, 1
        // Predicated region
        $region13: #{tpu_custom_call.1} parent=11 // pred_check
          %p153 = pneg %p47
        $region14: #{tpu_custom_call.1} parent=11 // pred_check_branch
          %155 = sbr.rel (%p153) target = $region16
        $region15: #{tpu_custom_call.1} parent=11 // pred_region
          _
        $region16: #{tpu_custom_call.1} parent=11 // pred_fallthru
          _
        // Predicated region
        $region17: #{tpu_custom_call.1} parent=11 // pred_check
          %p156 = pneg %p68
        $region18: #{tpu_custom_call.1} parent=11 // pred_check_branch
          %158 = sbr.rel (%p156) target = $region20
        $region19: #{tpu_custom_call.1} parent=11 // pred_region
          _
        $region20: #{tpu_custom_call.1} parent=11 // pred_fallthru
          _
        // Predicated region
        $region21: #{tpu_custom_call.1} parent=11 // pred_check
          %p159 = pneg %p89
        $region22: #{tpu_custom_call.1} parent=11 // pred_check_branch
          %161 = sbr.rel (%p159) target = $region24
        $region23: #{tpu_custom_call.1} parent=11 // pred_region
          _
        $region24: #{tpu_custom_call.1} parent=11 // pred_fallthru
          _
        // Predicated region
        $region25: #{tpu_custom_call.1} parent=11 // pred_check
          %p162 = pneg %p110
        $region26: #{tpu_custom_call.1} parent=11 // pred_check_branch
          %164 = sbr.rel (%p162) target = $region28
        $region27: #{tpu_custom_call.1} parent=11 // pred_region
          _
        $region28: #{tpu_custom_call.1} parent=11 // pred_fallthru
          _
      $region12: #{tpu_custom_call.1} parent=5 // pred_fallthru
        _
      %p165 = scmp.lt.s32.totalorder %s14, 4
      // Predicated region
      $region29: #{tpu_custom_call.1} parent=5 // pred_check
        %p166 = pneg %p165
      $region30: #{tpu_custom_call.1} parent=5 // pred_check_branch
        %168 = sbr.rel (%p166) target = $region32
      $region31: #{tpu_custom_call.1} parent=5 // pred_region
        _
      $region32: #{tpu_custom_call.1} parent=5 // pred_fallthru
        _
      %p169 = scmp.le.s32.totalorder 1, %s14
      %p170 = scmp.lt.s32.totalorder %s14, 5
      %p171 = pnand %p169, %p170
      %p172 = pneg %p171
      // Predicated region
      $region33: #{tpu_custom_call.1} parent=5 // pred_check
        _
      $region34: #{tpu_custom_call.1} parent=5 // pred_check_branch
        %174 = sbr.rel (%p171) target = $region36
      $region35: #{tpu_custom_call.1} parent=5 // pred_region
        %s175 = ssub.s32 %s14, 1
        %p176 = pneg %p47
        %p177 = pneg %p44
        %p178 = pneg %p68
        %p179 = pneg %p65
        %p180 = pneg %p89
        %p181 = pneg %p86
        %p182 = pneg %p110
        %p183 = pneg %p107
        %p184 = pneg %p138
        %p185 = pneg %p135
        %s186 = sand.u32 %s125, 1
        %s187 = scalar_lea.sflag [#allocation5], %s186
        %s188 = sand.u32 %s125, 1
        %s189 = smul.addr %s188, 128
        %s190 = scalar_lea.vmem [#allocation4], %s189
        %s191 = smul.u32 8, %s24
        %p193 = scmp.lt.s32.totalorder %s24, 0
        %s194 = ssub.s32 0, %s24
        %s195 = scalar_select %p193, %s194, %s24
        %s196 = sand.u32 %s195, 1
        %s197 = ssub.s32 0, %s196
        %s198 = scalar_select %p193, %s197, %s196
        %p199 = scmp.ne.s32.totalorder %s198, 0
        %p200 = scmp.lt.s32.totalorder %s198, 0
        %p201 = pnand %p200, %p199
        %p202 = pneg %p201
        %s203 = sadd.s32 %s198, 2
        %s204 = scalar_select %p202, %s203, %s198
        %p205 = scmp.eq.s32.totalorder %s24, 0
        // Predicated region
        $region37: #{tpu_custom_call.1} parent=35 // pred_check
          %p206 = pneg %p205
        $region38: #{tpu_custom_call.1} parent=35 // pred_check_branch
          %208 = sbr.rel (%p206) target = $region40
        $region39: #{tpu_custom_call.1} parent=35 // pred_region
          %s209 = smul.u32 0, 24
          %s210 = smul.u32 %s23, 432
          %s211 = sadd.s32 %s209, %s210
          %s212 = scalar_lea.vmem %s0, %s211
          %p214 = scmp.lt.u32.totalorder 18, 8
          %p215 = pneg %p214
          // Predicated region
          $region41: #{tpu_custom_call.1} parent=39 // pred_check
            _
          $region42: #{tpu_custom_call.1} parent=39 // pred_check_branch
            %217 = sbr.rel (%p214) target = $region44
          $region43: #{tpu_custom_call.1} parent=39 // pred_region
            %s250 = sand.u32 18, 7
            %p251 = scmp.eq.s32.totalorder %s250, 0
            %p252 = pneg %p251
            // Predicated region
            $region56: #{tpu_custom_call.1} parent=43 // pred_check
              _
            $region57: #{tpu_custom_call.1} parent=43 // pred_check_branch
              %254 = sbr.rel (%p251) target = $region59
            $region58: #{tpu_custom_call.1} parent=43 // pred_region
              %s255 = sand.u32 18, 7
              %s256 = ssub.s32 18, %s255
              %s257 = scalar_lea.vmem %s212, %s256
              %s258 = ssub.s32 18, %s255
              %s259 = scalar_lea.vmem [#allocation2], %s258
              loop: start=0, step=1, limit=1
              $region60: #{tpu_custom_call.1} parent=58 // loop_pre_header
                _
              $region61: #{tpu_custom_call.1} parent=58 // loop_header
                %s261 = sphi 0, %s265
                %p262 = scmp.ge.s32.totalorder %s261, 1
                %s266 = sphi %s212, %s212
                %s267 = sphi [#allocation2], [#allocation2]
              $region62: #{tpu_custom_call.1} parent=58 // loop_header_branch
                %264 = sbr.rel (%p262) target = $region66
              $region63: #{tpu_custom_call.1} parent=58 // loop_body
                %v268 = vld [vmem:[%s266] sm:$0xff]
                %269 = vst [vmem:[%s267] sm:$0xff] %v268
                %v270 = vld [vmem:[%s266 + $0x8] sm:$0xff]
                %271 = vst [vmem:[%s267 + $0x8] sm:$0xff] %v270
                %v272 = vld [vmem:[%s266 + $0x18] sm:$0xff]
                %273 = vst [vmem:[%s267 + $0x18] sm:$0xff] %v272
                %v274 = vld [vmem:[%s266 + $0x20] sm:$0xff]
                %275 = vst [vmem:[%s267 + $0x20] sm:$0xff] %v274
                %v276 = vld [vmem:[%s266 + $0x30] sm:$0xff]
                %277 = vst [vmem:[%s267 + $0x30] sm:$0xff] %v276
                %v278 = vld [vmem:[%s266 + $0x38] sm:$0xff]
                %279 = vst [vmem:[%s267 + $0x38] sm:$0xff] %v278
                %v280 = vld [vmem:[%s266 + $0x48] sm:$0xff]
                %281 = vst [vmem:[%s267 + $0x48] sm:$0xff] %v280
                %v282 = vld [vmem:[%s266 + $0x50] sm:$0xff]
                %283 = vst [vmem:[%s267 + $0x50] sm:$0xff] %v282
                %v284 = vld [vmem:[%s266 + $0x60] sm:$0xff]
                %285 = vst [vmem:[%s267 + $0x60] sm:$0xff] %v284
                %v286 = vld [vmem:[%s266 + $0x68] sm:$0xff]
                %287 = vst [vmem:[%s267 + $0x68] sm:$0xff] %v286
                %v288 = vld [vmem:[%s266 + $0x78] sm:$0xff]
                %289 = vst [vmem:[%s267 + $0x78] sm:$0xff] %v288
                %v290 = vld [vmem:[%s266 + $0x80] sm:$0xff]
                %291 = vst [vmem:[%s267 + $0x80] sm:$0xff] %v290
                %v292 = vld [vmem:[%s266 + $0x90] sm:$0xff]
                %293 = vst [vmem:[%s267 + $0x90] sm:$0xff] %v292
                %v294 = vld [vmem:[%s266 + $0x98] sm:$0xff]
                %295 = vst [vmem:[%s267 + $0x98] sm:$0xff] %v294
                %v296 = vld [vmem:[%s266 + $0xa8] sm:$0xff]
                %297 = vst [vmem:[%s267 + $0xa8] sm:$0xff] %v296
                %v298 = vld [vmem:[%s266 + $0xb0] sm:$0xff]
                %299 = vst [vmem:[%s267 + $0xb0] sm:$0xff] %v298
                %v300 = vld [vmem:[%s266 + $0xc0] sm:$0xff]
                %301 = vst [vmem:[%s267 + $0xc0] sm:$0xff] %v300
                %v302 = vld [vmem:[%s266 + $0xc8] sm:$0xff]
                %303 = vst [vmem:[%s267 + $0xc8] sm:$0xff] %v302
                %v304 = vld [vmem:[%s266 + $0xd8] sm:$0xff]
                %305 = vst [vmem:[%s267 + $0xd8] sm:$0xff] %v304
                %v306 = vld [vmem:[%s266 + $0xe0] sm:$0xff]
                %307 = vst [vmem:[%s267 + $0xe0] sm:$0xff] %v306
              $region64: #{tpu_custom_call.1} parent=58 // loop_footer
                %s265 = sadd.s32 1, %s261
              $region65: #{tpu_custom_call.1} parent=58 // loop_footer_branch
                %260 = sbr.rel target = $region61
              $region66: #{tpu_custom_call.1} parent=58 // loop_exit
                _
              %s308 = sshllo.u32 0, %s255
              loop: start=0, step=1, limit=1
              $region67: #{tpu_custom_call.1} parent=58 // loop_pre_header
                _
              $region68: #{tpu_custom_call.1} parent=58 // loop_header
                %s310 = sphi 0, %s314
                %p311 = scmp.ge.s32.totalorder %s310, 1
                %s315 = sphi %s257, %s257
                %s316 = sphi %s259, %s259
              $region69: #{tpu_custom_call.1} parent=58 // loop_header_branch
                %313 = sbr.rel (%p311) target = $region73
              $region70: #{tpu_custom_call.1} parent=58 // loop_body
                %v317 = vld [vmem:[%s315] sm:%s308]
                %318 = vst [vmem:[%s316] sm:%s308] %v317
                %v319 = vld [vmem:[%s315 + $0x18] sm:%s308]
                %320 = vst [vmem:[%s316 + $0x18] sm:%s308] %v319
                %v321 = vld [vmem:[%s315 + $0x30] sm:%s308]
                %322 = vst [vmem:[%s316 + $0x30] sm:%s308] %v321
                %v323 = vld [vmem:[%s315 + $0x48] sm:%s308]
                %324 = vst [vmem:[%s316 + $0x48] sm:%s308] %v323
                %v325 = vld [vmem:[%s315 + $0x60] sm:%s308]
                %326 = vst [vmem:[%s316 + $0x60] sm:%s308] %v325
                %v327 = vld [vmem:[%s315 + $0x78] sm:%s308]
                %328 = vst [vmem:[%s316 + $0x78] sm:%s308] %v327
                %v329 = vld [vmem:[%s315 + $0x90] sm:%s308]
                %330 = vst [vmem:[%s316 + $0x90] sm:%s308] %v329
                %v331 = vld [vmem:[%s315 + $0xa8] sm:%s308]
                %332 = vst [vmem:[%s316 + $0xa8] sm:%s308] %v331
                %v333 = vld [vmem:[%s315 + $0xc0] sm:%s308]
                %334 = vst [vmem:[%s316 + $0xc0] sm:%s308] %v333
                %v335 = vld [vmem:[%s315 + $0xd8] sm:%s308]
                %336 = vst [vmem:[%s316 + $0xd8] sm:%s308] %v335
              $region71: #{tpu_custom_call.1} parent=58 // loop_footer
                %s314 = sadd.s32 1, %s310
              $region72: #{tpu_custom_call.1} parent=58 // loop_footer_branch
                %309 = sbr.rel target = $region68
              $region73: #{tpu_custom_call.1} parent=58 // loop_exit
                _
            $region59: #{tpu_custom_call.1} parent=43 // pred_fallthru
              _
          $region44: #{tpu_custom_call.1} parent=39 // pred_fallthru
            _
          // Predicated region
          $region45: #{tpu_custom_call.1} parent=39 // pred_check
            %p218 = pneg %p214
          $region46: #{tpu_custom_call.1} parent=39 // pred_check_branch
            %220 = sbr.rel (%p218) target = $region48
          $region47: #{tpu_custom_call.1} parent=39 // pred_region
            %s221 = sshllo.u32 0, 18
            loop: start=0, step=1, limit=1
            $region49: #{tpu_custom_call.1} parent=47 // loop_pre_header
              _
            $region50: #{tpu_custom_call.1} parent=47 // loop_header
              %s223 = sphi 0, %s227
              %p224 = scmp.ge.s32.totalorder %s223, 1
              %s228 = sphi %s212, %s212
              %s229 = sphi [#allocation2], [#allocation2]
            $region51: #{tpu_custom_call.1} parent=47 // loop_header_branch
              %226 = sbr.rel (%p224) target = $region55
            $region52: #{tpu_custom_call.1} parent=47 // loop_body
              %v230 = vld [vmem:[%s228] sm:%s221]
              %231 = vst [vmem:[%s229] sm:%s221] %v230
              %v232 = vld [vmem:[%s228 + $0x18] sm:%s221]
              %233 = vst [vmem:[%s229 + $0x18] sm:%s221] %v232
              %v234 = vld [vmem:[%s228 + $0x30] sm:%s221]
              %235 = vst [vmem:[%s229 + $0x30] sm:%s221] %v234
              %v236 = vld [vmem:[%s228 + $0x48] sm:%s221]
              %237 = vst [vmem:[%s229 + $0x48] sm:%s221] %v236
              %v238 = vld [vmem:[%s228 + $0x60] sm:%s221]
              %239 = vst [vmem:[%s229 + $0x60] sm:%s221] %v238
              %v240 = vld [vmem:[%s228 + $0x78] sm:%s221]
              %241 = vst [vmem:[%s229 + $0x78] sm:%s221] %v240
              %v242 = vld [vmem:[%s228 + $0x90] sm:%s221]
              %243 = vst [vmem:[%s229 + $0x90] sm:%s221] %v242
              %v244 = vld [vmem:[%s228 + $0xa8] sm:%s221]
              %245 = vst [vmem:[%s229 + $0xa8] sm:%s221] %v244
              %v246 = vld [vmem:[%s228 + $0xc0] sm:%s221]
              %247 = vst [vmem:[%s229 + $0xc0] sm:%s221] %v246
              %v248 = vld [vmem:[%s228 + $0xd8] sm:%s221]
              %249 = vst [vmem:[%s229 + $0xd8] sm:%s221] %v248
            $region53: #{tpu_custom_call.1} parent=47 // loop_footer
              %s227 = sadd.s32 1, %s223
            $region54: #{tpu_custom_call.1} parent=47 // loop_footer_branch
              %222 = sbr.rel target = $region50
            $region55: #{tpu_custom_call.1} parent=47 // loop_exit
              _
          $region48: #{tpu_custom_call.1} parent=39 // pred_fallthru
            _
          // Predicated region
          $region74: #{tpu_custom_call.1} parent=39 // pred_check
            _
          $region75: #{tpu_custom_call.1} parent=39 // pred_check_branch
            %339 = sbr.rel (0) target = $region77
          $region76: #{tpu_custom_call.1} parent=39 // pred_region
            %340 = vsyncadd [#allocation3], 2880
          $region77: #{tpu_custom_call.1} parent=39 // pred_fallthru
            _
        $region40: #{tpu_custom_call.1} parent=35 // pred_fallthru
          _
        %s341 = sadd.s32 %s24, 1
        %p342 = scmp.lt.s32.totalorder %s341, 2
        // Predicated region
        $region78: #{tpu_custom_call.1} parent=35 // pred_check
          %p343 = pneg %p342
        $region79: #{tpu_custom_call.1} parent=35 // pred_check_branch
          %345 = sbr.rel (%p343) target = $region81
        $region80: #{tpu_custom_call.1} parent=35 // pred_region
          %s346 = ssub.s32 1, %s204
          %s347 = smul.u32 %s341, 8
          %s348 = smul.u32 %s347, 24
          %s349 = smul.u32 %s23, 432
          %s350 = sadd.s32 %s348, %s349
          %s351 = scalar_lea.vmem %s0, %s350
          %s352 = smul.u32 %s346, 240
          %s353 = scalar_lea.vmem [#allocation2], %s352
          %s354 = scalar_lea.sflag [#allocation3], %s346
          %p356 = scmp.lt.u32.totalorder 18, 8
          %p357 = pneg %p356
          // Predicated region
          $region82: #{tpu_custom_call.1} parent=80 // pred_check
            _
          $region83: #{tpu_custom_call.1} parent=80 // pred_check_branch
            %359 = sbr.rel (%p356) target = $region85
          $region84: #{tpu_custom_call.1} parent=80 // pred_region
            %s392 = sand.u32 18, 7
            %p393 = scmp.eq.s32.totalorder %s392, 0
            %p394 = pneg %p393
            // Predicated region
            $region97: #{tpu_custom_call.1} parent=84 // pred_check
              _
            $region98: #{tpu_custom_call.1} parent=84 // pred_check_branch
              %396 = sbr.rel (%p393) target = $region100
            $region99: #{tpu_custom_call.1} parent=84 // pred_region
              %s397 = sand.u32 18, 7
              %s398 = ssub.s32 18, %s397
              %s399 = scalar_lea.vmem %s351, %s398
              %s400 = ssub.s32 18, %s397
              %s401 = scalar_lea.vmem %s353, %s400 [#allocation2]
              loop: start=0, step=1, limit=1
              $region101: #{tpu_custom_call.1} parent=99 // loop_pre_header
                _
              $region102: #{tpu_custom_call.1} parent=99 // loop_header
                %s403 = sphi 0, %s407
                %p404 = scmp.ge.s32.totalorder %s403, 1
                %s408 = sphi %s351, %s351
                %s409 = sphi %s353, %s353
              $region103: #{tpu_custom_call.1} parent=99 // loop_header_branch
                %406 = sbr.rel (%p404) target = $region107
              $region104: #{tpu_custom_call.1} parent=99 // loop_body
                %v410 = vld [vmem:[%s408] sm:$0xff]
                %411 = vst [vmem:[%s409] sm:$0xff] %v410
                %v412 = vld [vmem:[%s408 + $0x8] sm:$0xff]
                %413 = vst [vmem:[%s409 + $0x8] sm:$0xff] %v412
                %v414 = vld [vmem:[%s408 + $0x18] sm:$0xff]
                %415 = vst [vmem:[%s409 + $0x18] sm:$0xff] %v414
                %v416 = vld [vmem:[%s408 + $0x20] sm:$0xff]
                %417 = vst [vmem:[%s409 + $0x20] sm:$0xff] %v416
                %v418 = vld [vmem:[%s408 + $0x30] sm:$0xff]
                %419 = vst [vmem:[%s409 + $0x30] sm:$0xff] %v418
                %v420 = vld [vmem:[%s408 + $0x38] sm:$0xff]
                %421 = vst [vmem:[%s409 + $0x38] sm:$0xff] %v420
                %v422 = vld [vmem:[%s408 + $0x48] sm:$0xff]
                %423 = vst [vmem:[%s409 + $0x48] sm:$0xff] %v422
                %v424 = vld [vmem:[%s408 + $0x50] sm:$0xff]
                %425 = vst [vmem:[%s409 + $0x50] sm:$0xff] %v424
                %v426 = vld [vmem:[%s408 + $0x60] sm:$0xff]
                %427 = vst [vmem:[%s409 + $0x60] sm:$0xff] %v426
                %v428 = vld [vmem:[%s408 + $0x68] sm:$0xff]
                %429 = vst [vmem:[%s409 + $0x68] sm:$0xff] %v428
                %v430 = vld [vmem:[%s408 + $0x78] sm:$0xff]
                %431 = vst [vmem:[%s409 + $0x78] sm:$0xff] %v430
                %v432 = vld [vmem:[%s408 + $0x80] sm:$0xff]
                %433 = vst [vmem:[%s409 + $0x80] sm:$0xff] %v432
                %v434 = vld [vmem:[%s408 + $0x90] sm:$0xff]
                %435 = vst [vmem:[%s409 + $0x90] sm:$0xff] %v434
                %v436 = vld [vmem:[%s408 + $0x98] sm:$0xff]
                %437 = vst [vmem:[%s409 + $0x98] sm:$0xff] %v436
                %v438 = vld [vmem:[%s408 + $0xa8] sm:$0xff]
                %439 = vst [vmem:[%s409 + $0xa8] sm:$0xff] %v438
                %v440 = vld [vmem:[%s408 + $0xb0] sm:$0xff]
                %441 = vst [vmem:[%s409 + $0xb0] sm:$0xff] %v440
                %v442 = vld [vmem:[%s408 + $0xc0] sm:$0xff]
                %443 = vst [vmem:[%s409 + $0xc0] sm:$0xff] %v442
                %v444 = vld [vmem:[%s408 + $0xc8] sm:$0xff]
                %445 = vst [vmem:[%s409 + $0xc8] sm:$0xff] %v444
                %v446 = vld [vmem:[%s408 + $0xd8] sm:$0xff]
                %447 = vst [vmem:[%s409 + $0xd8] sm:$0xff] %v446
                %v448 = vld [vmem:[%s408 + $0xe0] sm:$0xff]
                %449 = vst [vmem:[%s409 + $0xe0] sm:$0xff] %v448
              $region105: #{tpu_custom_call.1} parent=99 // loop_footer
                %s407 = sadd.s32 1, %s403
              $region106: #{tpu_custom_call.1} parent=99 // loop_footer_branch
                %402 = sbr.rel target = $region102
              $region107: #{tpu_custom_call.1} parent=99 // loop_exit
                _
              %s450 = sshllo.u32 0, %s397
              loop: start=0, step=1, limit=1
              $region108: #{tpu_custom_call.1} parent=99 // loop_pre_header
                _
              $region109: #{tpu_custom_call.1} parent=99 // loop_header
                %s452 = sphi 0, %s456
                %p453 = scmp.ge.s32.totalorder %s452, 1
                %s457 = sphi %s399, %s399
                %s458 = sphi %s401, %s401
              $region110: #{tpu_custom_call.1} parent=99 // loop_header_branch
                %455 = sbr.rel (%p453) target = $region114
              $region111: #{tpu_custom_call.1} parent=99 // loop_body
                %v459 = vld [vmem:[%s457] sm:%s450]
                %460 = vst [vmem:[%s458] sm:%s450] %v459
                %v461 = vld [vmem:[%s457 + $0x18] sm:%s450]
                %462 = vst [vmem:[%s458 + $0x18] sm:%s450] %v461
                %v463 = vld [vmem:[%s457 + $0x30] sm:%s450]
                %464 = vst [vmem:[%s458 + $0x30] sm:%s450] %v463
                %v465 = vld [vmem:[%s457 + $0x48] sm:%s450]
                %466 = vst [vmem:[%s458 + $0x48] sm:%s450] %v465
                %v467 = vld [vmem:[%s457 + $0x60] sm:%s450]
                %468 = vst [vmem:[%s458 + $0x60] sm:%s450] %v467
                %v469 = vld [vmem:[%s457 + $0x78] sm:%s450]
                %470 = vst [vmem:[%s458 + $0x78] sm:%s450] %v469
                %v471 = vld [vmem:[%s457 + $0x90] sm:%s450]
                %472 = vst [vmem:[%s458 + $0x90] sm:%s450] %v471
                %v473 = vld [vmem:[%s457 + $0xa8] sm:%s450]
                %474 = vst [vmem:[%s458 + $0xa8] sm:%s450] %v473
                %v475 = vld [vmem:[%s457 + $0xc0] sm:%s450]
                %476 = vst [vmem:[%s458 + $0xc0] sm:%s450] %v475
                %v477 = vld [vmem:[%s457 + $0xd8] sm:%s450]
                %478 = vst [vmem:[%s458 + $0xd8] sm:%s450] %v477
              $region112: #{tpu_custom_call.1} parent=99 // loop_footer
                %s456 = sadd.s32 1, %s452
              $region113: #{tpu_custom_call.1} parent=99 // loop_footer_branch
                %451 = sbr.rel target = $region109
              $region114: #{tpu_custom_call.1} parent=99 // loop_exit
                _
            $region100: #{tpu_custom_call.1} parent=84 // pred_fallthru
              _
          $region85: #{tpu_custom_call.1} parent=80 // pred_fallthru
            _
          // Predicated region
          $region86: #{tpu_custom_call.1} parent=80 // pred_check
            %p360 = pneg %p356
          $region87: #{tpu_custom_call.1} parent=80 // pred_check_branch
            %362 = sbr.rel (%p360) target = $region89
          $region88: #{tpu_custom_call.1} parent=80 // pred_region
            %s363 = sshllo.u32 0, 18
            loop: start=0, step=1, limit=1
            $region90: #{tpu_custom_call.1} parent=88 // loop_pre_header
              _
            $region91: #{tpu_custom_call.1} parent=88 // loop_header
              %s365 = sphi 0, %s369
              %p366 = scmp.ge.s32.totalorder %s365, 1
              %s370 = sphi %s351, %s351
              %s371 = sphi %s353, %s353
            $region92: #{tpu_custom_call.1} parent=88 // loop_header_branch
              %368 = sbr.rel (%p366) target = $region96
            $region93: #{tpu_custom_call.1} parent=88 // loop_body
              %v372 = vld [vmem:[%s370] sm:%s363]
              %373 = vst [vmem:[%s371] sm:%s363] %v372
              %v374 = vld [vmem:[%s370 + $0x18] sm:%s363]
              %375 = vst [vmem:[%s371 + $0x18] sm:%s363] %v374
              %v376 = vld [vmem:[%s370 + $0x30] sm:%s363]
              %377 = vst [vmem:[%s371 + $0x30] sm:%s363] %v376
              %v378 = vld [vmem:[%s370 + $0x48] sm:%s363]
              %379 = vst [vmem:[%s371 + $0x48] sm:%s363] %v378
              %v380 = vld [vmem:[%s370 + $0x60] sm:%s363]
              %381 = vst [vmem:[%s371 + $0x60] sm:%s363] %v380
              %v382 = vld [vmem:[%s370 + $0x78] sm:%s363]
              %383 = vst [vmem:[%s371 + $0x78] sm:%s363] %v382
              %v384 = vld [vmem:[%s370 + $0x90] sm:%s363]
              %385 = vst [vmem:[%s371 + $0x90] sm:%s363] %v384
              %v386 = vld [vmem:[%s370 + $0xa8] sm:%s363]
              %387 = vst [vmem:[%s371 + $0xa8] sm:%s363] %v386
              %v388 = vld [vmem:[%s370 + $0xc0] sm:%s363]
              %389 = vst [vmem:[%s371 + $0xc0] sm:%s363] %v388
              %v390 = vld [vmem:[%s370 + $0xd8] sm:%s363]
              %391 = vst [vmem:[%s371 + $0xd8] sm:%s363] %v390
            $region94: #{tpu_custom_call.1} parent=88 // loop_footer
              %s369 = sadd.s32 1, %s365
            $region95: #{tpu_custom_call.1} parent=88 // loop_footer_branch
              %364 = sbr.rel target = $region91
            $region96: #{tpu_custom_call.1} parent=88 // loop_exit
              _
          $region89: #{tpu_custom_call.1} parent=80 // pred_fallthru
            _
          // Predicated region
          $region115: #{tpu_custom_call.1} parent=80 // pred_check
            _
          $region116: #{tpu_custom_call.1} parent=80 // pred_check_branch
            %481 = sbr.rel (0) target = $region118
          $region117: #{tpu_custom_call.1} parent=80 // pred_region
            %482 = vsyncadd %s354, 2880
          $region118: #{tpu_custom_call.1} parent=80 // pred_fallthru
            _
        $region81: #{tpu_custom_call.1} parent=35 // pred_fallthru
          _
        %s483 = smul.u32 %s204, 240
        %s484 = scalar_lea.vmem [#allocation2], %s483
        %s485 = scalar_lea.sflag [#allocation3], %s204
        %s486 = smul.u32 10, 18
        %s487 = smul.u32 %s486, 1
        %s488 = sshll.u32 %s487, 4
        %489 = dma.done %s485, %s488
        %v490 = vld [vmem:[%s484] sm:$0xff]
        %v491 = vld [vmem:[%s484 + $0x8] sm:$0xff]
        %v492 = vld [vmem:[%s484 + $0x10] sm:$0x3]
        %v493 = vld [vmem:[%s484 + $0x18] sm:$0xff]
        %v494 = vld [vmem:[%s484 + $0x20] sm:$0xff]
        %v495 = vld [vmem:[%s484 + $0x28] sm:$0x3]
        %v496 = vld [vmem:[%s484 + $0x30] sm:$0xff]
        %v497 = vld [vmem:[%s484 + $0x38] sm:$0xff]
        %v498 = vld [vmem:[%s484 + $0x40] sm:$0x3]
        %v499 = vld [vmem:[%s484 + $0x48] sm:$0xff]
        %v500 = vld [vmem:[%s484 + $0x50] sm:$0xff]
        %v501 = vld [vmem:[%s484 + $0x58] sm:$0x3]
        %v502 = vld [vmem:[%s484 + $0x60] sm:$0xff]
        %v503 = vld [vmem:[%s484 + $0x68] sm:$0xff]
        %v504 = vld [vmem:[%s484 + $0x70] sm:$0x3]
        %v505 = vld [vmem:[%s484 + $0x78] sm:$0xff]
        %v506 = vld [vmem:[%s484 + $0x80] sm:$0xff]
        %v507 = vld [vmem:[%s484 + $0x88] sm:$0x3]
        %v508 = vld [vmem:[%s484 + $0x90] sm:$0xff]
        %v509 = vld [vmem:[%s484 + $0x98] sm:$0xff]
        %v510 = vld [vmem:[%s484 + $0xa0] sm:$0x3]
        %v511 = vld [vmem:[%s484 + $0xa8] sm:$0xff]
        %v512 = vld [vmem:[%s484 + $0xb0] sm:$0xff]
        %v513 = vld [vmem:[%s484 + $0xb8] sm:$0x3]
        %v514 = vld [vmem:[%s484 + $0xc0] sm:$0xff]
        %v515 = vld [vmem:[%s484 + $0xc8] sm:$0xff]
        %v516 = vld [vmem:[%s484 + $0xd0] sm:$0x3]
        %v517 = vld [vmem:[%s484 + $0xd8] sm:$0xff]
        %v518 = vld [vmem:[%s484 + $0xe0] sm:$0xff]
        %v519 = vld [vmem:[%s484 + $0xe8] sm:$0x3]
        %v520 = vld [vmem:[%s1] sm:$0x7]
        %v521 = vld [vmem:[%s1 + $0x4] sm:$0x7]
        %v522 = vld [vmem:[%s1 + $0x8] sm:$0x7]
        %v523 = vlaneseq
        %v524 = vshrl.u32 %v523, 7
        %v525 = vsub.s32 0, %v524
        %v526 = vrot.slane %v520, %v525
        %v527 = vmul.f32 %v490, %v526
        %v528 = vmul.f32 %v491, %v526
        %v529 = vmul.f32 %v493, %v526
        %v530 = vmul.f32 %v494, %v526
        %v531 = vmul.f32 %v496, %v526
        %v532 = vmul.f32 %v497, %v526
        %v533 = vmul.f32 %v499, %v526
        %v534 = vmul.f32 %v500, %v526
        %v535 = vmul.f32 %v502, %v526
        %v536 = vmul.f32 %v503, %v526
        %v537 = vmul.f32 %v505, %v526
        %v538 = vmul.f32 %v506, %v526
        %v539 = vmul.f32 %v508, %v526
        %v540 = vmul.f32 %v509, %v526
        %v541 = vmul.f32 %v511, %v526
        %v542 = vmul.f32 %v512, %v526
        %v543 = vadd.f32 %v527, 0.0
        %v544 = vadd.f32 %v528, 0.0
        %v545 = vadd.f32 %v529, 0.0
        %v546 = vadd.f32 %v530, 0.0
        %v547 = vadd.f32 %v531, 0.0
        %v548 = vadd.f32 %v532, 0.0
        %v549 = vadd.f32 %v533, 0.0
        %v550 = vadd.f32 %v534, 0.0
        %v551 = vadd.f32 %v535, 0.0
        %v552 = vadd.f32 %v536, 0.0
        %v553 = vadd.f32 %v537, 0.0
        %v554 = vadd.f32 %v538, 0.0
        %v555 = vadd.f32 %v539, 0.0
        %v556 = vadd.f32 %v540, 0.0
        %v557 = vadd.f32 %v541, 0.0
        %v558 = vadd.f32 %v542, 0.0
        %v559 = vlaneseq
        %v560 = vshrl.u32 %v559, 7
        %v561 = vsub.s32 1, %v560
        %v562 = vrot.slane %v520, %v561
        %v563 = vmul.f32 %v490, %v562
        %v564 = vmul.f32 %v491, %v562
        %v565 = vmul.f32 %v492, %v562
        %v566 = vmul.f32 %v493, %v562
        %v567 = vmul.f32 %v494, %v562
        %v568 = vmul.f32 %v495, %v562
        %v569 = vmul.f32 %v496, %v562
        %v570 = vmul.f32 %v497, %v562
        %v571 = vmul.f32 %v498, %v562
        %v572 = vmul.f32 %v499, %v562
        %v573 = vmul.f32 %v500, %v562
        %v574 = vmul.f32 %v501, %v562
        %v575 = vmul.f32 %v502, %v562
        %v576 = vmul.f32 %v503, %v562
        %v577 = vmul.f32 %v504, %v562
        %v578 = vmul.f32 %v505, %v562
        %v579 = vmul.f32 %v506, %v562
        %v580 = vmul.f32 %v507, %v562
        %v581 = vmul.f32 %v508, %v562
        %v582 = vmul.f32 %v509, %v562
        %v583 = vmul.f32 %v510, %v562
        %v584 = vmul.f32 %v511, %v562
        %v585 = vmul.f32 %v512, %v562
        %v586 = vmul.f32 %v513, %v562
        %vm611 = vcmask 1046528
        %v612 = vrot.slane %v563, 1
        %v613 = vrot.slane %v564, 1
        %v614 = vsel %vm611, %v612, %v613
        %v615 = vrot.slane %v565, 1
        %v616 = vsel %vm611, %v613, %v615
        %v617 = vrot.slane %v566, 1
        %v618 = vrot.slane %v567, 1
        %v619 = vsel %vm611, %v617, %v618
        %v620 = vrot.slane %v568, 1
        %v621 = vsel %vm611, %v618, %v620
        %v622 = vrot.slane %v569, 1
        %v623 = vrot.slane %v570, 1
        %v624 = vsel %vm611, %v622, %v623
        %v625 = vrot.slane %v571, 1
        %v626 = vsel %vm611, %v623, %v625
        %v627 = vrot.slane %v572, 1
        %v628 = vrot.slane %v573, 1
        %v629 = vsel %vm611, %v627, %v628
        %v630 = vrot.slane %v574, 1
        %v631 = vsel %vm611, %v628, %v630
        %v632 = vrot.slane %v575, 1
        %v633 = vrot.slane %v576, 1
        %v634 = vsel %vm611, %v632, %v633
        %v635 = vrot.slane %v577, 1
        %v636 = vsel %vm611, %v633, %v635
        %v637 = vrot.slane %v578, 1
        %v638 = vrot.slane %v579, 1
        %v639 = vsel %vm611, %v637, %v638
        %v640 = vrot.slane %v580, 1
        %v641 = vsel %vm611, %v638, %v640
        %v642 = vrot.slane %v581, 1
        %v643 = vrot.slane %v582, 1
        %v644 = vsel %vm611, %v642, %v643
        %v645 = vrot.slane %v583, 1
        %v646 = vsel %vm611, %v643, %v645
        %v647 = vrot.slane %v584, 1
        %v648 = vrot.slane %v585, 1
        %v649 = vsel %vm611, %v647, %v648
        %v650 = vrot.slane %v586, 1
        %v651 = vsel %vm611, %v648, %v650
        %v668 = vadd.f32 %v543, %v614
        %v669 = vadd.f32 %v544, %v616
        %v670 = vadd.f32 %v545, %v619
        %v671 = vadd.f32 %v546, %v621
        %v672 = vadd.f32 %v547, %v624
        %v673 = vadd.f32 %v548, %v626
        %v674 = vadd.f32 %v549, %v629
        %v675 = vadd.f32 %v550, %v631
        %v676 = vadd.f32 %v551, %v634
        %v677 = vadd.f32 %v552, %v636
        %v678 = vadd.f32 %v553, %v639
        %v679 = vadd.f32 %v554, %v641
        %v680 = vadd.f32 %v555, %v644
        %v681 = vadd.f32 %v556, %v646
        %v682 = vadd.f32 %v557, %v649
        %v683 = vadd.f32 %v558, %v651
        %v684 = vlaneseq
        %v685 = vshrl.u32 %v684, 7
        %v686 = vsub.s32 2, %v685
        %v687 = vrot.slane %v520, %v686
        %v688 = vmul.f32 %v490, %v687
        %v689 = vmul.f32 %v491, %v687
        %v690 = vmul.f32 %v492, %v687
        %v691 = vmul.f32 %v493, %v687
        %v692 = vmul.f32 %v494, %v687
        %v693 = vmul.f32 %v495, %v687
        %v694 = vmul.f32 %v496, %v687
        %v695 = vmul.f32 %v497, %v687
        %v696 = vmul.f32 %v498, %v687
        %v697 = vmul.f32 %v499, %v687
        %v698 = vmul.f32 %v500, %v687
        %v699 = vmul.f32 %v501, %v687
        %v700 = vmul.f32 %v502, %v687
        %v701 = vmul.f32 %v503, %v687
        %v702 = vmul.f32 %v504, %v687
        %v703 = vmul.f32 %v505, %v687
        %v704 = vmul.f32 %v506, %v687
        %v705 = vmul.f32 %v507, %v687
        %v706 = vmul.f32 %v508, %v687
        %v707 = vmul.f32 %v509, %v687
        %v708 = vmul.f32 %v510, %v687
        %v709 = vmul.f32 %v511, %v687
        %v710 = vmul.f32 %v512, %v687
        %v711 = vmul.f32 %v513, %v687
        %vm736 = vcmask 1045504
        %v737 = vrot.slane %v688, 2
        %v738 = vrot.slane %v689, 2
        %v739 = vsel %vm736, %v737, %v738
        %v740 = vrot.slane %v690, 2
        %v741 = vsel %vm736, %v738, %v740
        %v742 = vrot.slane %v691, 2
        %v743 = vrot.slane %v692, 2
        %v744 = vsel %vm736, %v742, %v743
        %v745 = vrot.slane %v693, 2
        %v746 = vsel %vm736, %v743, %v745
        %v747 = vrot.slane %v694, 2
        %v748 = vrot.slane %v695, 2
        %v749 = vsel %vm736, %v747, %v748
        %v750 = vrot.slane %v696, 2
        %v751 = vsel %vm736, %v748, %v750
        %v752 = vrot.slane %v697, 2
        %v753 = vrot.slane %v698, 2
        %v754 = vsel %vm736, %v752, %v753
        %v755 = vrot.slane %v699, 2
        %v756 = vsel %vm736, %v753, %v755
        %v757 = vrot.slane %v700, 2
        %v758 = vrot.slane %v701, 2
        %v759 = vsel %vm736, %v757, %v758
        %v760 = vrot.slane %v702, 2
        %v761 = vsel %vm736, %v758, %v760
        %v762 = vrot.slane %v703, 2
        %v763 = vrot.slane %v704, 2
        %v764 = vsel %vm736, %v762, %v763
        %v765 = vrot.slane %v705, 2
        %v766 = vsel %vm736, %v763, %v765
        %v767 = vrot.slane %v706, 2
        %v768 = vrot.slane %v707, 2
        %v769 = vsel %vm736, %v767, %v768
        %v770 = vrot.slane %v708, 2
        %v771 = vsel %vm736, %v768, %v770
        %v772 = vrot.slane %v709, 2
        %v773 = vrot.slane %v710, 2
        %v774 = vsel %vm736, %v772, %v773
        %v775 = vrot.slane %v711, 2
        %v776 = vsel %vm736, %v773, %v775
        %v793 = vadd.f32 %v668, %v739
        %v794 = vadd.f32 %v669, %v741
        %v795 = vadd.f32 %v670, %v744
        %v796 = vadd.f32 %v671, %v746
        %v797 = vadd.f32 %v672, %v749
        %v798 = vadd.f32 %v673, %v751
        %v799 = vadd.f32 %v674, %v754
        %v800 = vadd.f32 %v675, %v756
        %v801 = vadd.f32 %v676, %v759
        %v802 = vadd.f32 %v677, %v761
        %v803 = vadd.f32 %v678, %v764
        %v804 = vadd.f32 %v679, %v766
        %v805 = vadd.f32 %v680, %v769
        %v806 = vadd.f32 %v681, %v771
        %v807 = vadd.f32 %v682, %v774
        %v808 = vadd.f32 %v683, %v776
        %v809 = vlaneseq
        %v810 = vshrl.u32 %v809, 7
        %v811 = vsub.s32 0, %v810
        %v812 = vrot.slane %v521, %v811
        %v813 = vmul.f32 %v493, %v812
        %v814 = vmul.f32 %v494, %v812
        %v815 = vmul.f32 %v496, %v812
        %v816 = vmul.f32 %v497, %v812
        %v817 = vmul.f32 %v499, %v812
        %v818 = vmul.f32 %v500, %v812
        %v819 = vmul.f32 %v502, %v812
        %v820 = vmul.f32 %v503, %v812
        %v821 = vmul.f32 %v505, %v812
        %v822 = vmul.f32 %v506, %v812
        %v823 = vmul.f32 %v508, %v812
        %v824 = vmul.f32 %v509, %v812
        %v825 = vmul.f32 %v511, %v812
        %v826 = vmul.f32 %v512, %v812
        %v827 = vmul.f32 %v514, %v812
        %v828 = vmul.f32 %v515, %v812
        %v829 = vadd.f32 %v793, %v813
        %v830 = vadd.f32 %v794, %v814
        %v831 = vadd.f32 %v795, %v815
        %v832 = vadd.f32 %v796, %v816
        %v833 = vadd.f32 %v797, %v817
        %v834 = vadd.f32 %v798, %v818
        %v835 = vadd.f32 %v799, %v819
        %v836 = vadd.f32 %v800, %v820
        %v837 = vadd.f32 %v801, %v821
        %v838 = vadd.f32 %v802, %v822
        %v839 = vadd.f32 %v803, %v823
        %v840 = vadd.f32 %v804, %v824
        %v841 = vadd.f32 %v805, %v825
        %v842 = vadd.f32 %v806, %v826
        %v843 = vadd.f32 %v807, %v827
        %v844 = vadd.f32 %v808, %v828
        %v845 = vlaneseq
        %v846 = vshrl.u32 %v845, 7
        %v847 = vsub.s32 1, %v846
        %v848 = vrot.slane %v521, %v847
        %v849 = vmul.f32 %v493, %v848
        %v850 = vmul.f32 %v494, %v848
        %v851 = vmul.f32 %v495, %v848
        %v852 = vmul.f32 %v496, %v848
        %v853 = vmul.f32 %v497, %v848
        %v854 = vmul.f32 %v498, %v848
        %v855 = vmul.f32 %v499, %v848
        %v856 = vmul.f32 %v500, %v848
        %v857 = vmul.f32 %v501, %v848
        %v858 = vmul.f32 %v502, %v848
        %v859 = vmul.f32 %v503, %v848
        %v860 = vmul.f32 %v504, %v848
        %v861 = vmul.f32 %v505, %v848
        %v862 = vmul.f32 %v506, %v848
        %v863 = vmul.f32 %v507, %v848
        %v864 = vmul.f32 %v508, %v848
        %v865 = vmul.f32 %v509, %v848
        %v866 = vmul.f32 %v510, %v848
        %v867 = vmul.f32 %v511, %v848
        %v868 = vmul.f32 %v512, %v848
        %v869 = vmul.f32 %v513, %v848
        %v870 = vmul.f32 %v514, %v848
        %v871 = vmul.f32 %v515, %v848
        %v872 = vmul.f32 %v516, %v848
        %v897 = vrot.slane %v849, 1
        %v898 = vrot.slane %v850, 1
        %v899 = vsel %vm611, %v897, %v898
        %v900 = vrot.slane %v851, 1
        %v901 = vsel %vm611, %v898, %v900
        %v902 = vrot.slane %v852, 1
        %v903 = vrot.slane %v853, 1
        %v904 = vsel %vm611, %v902, %v903
        %v905 = vrot.slane %v854, 1
        %v906 = vsel %vm611, %v903, %v905
        %v907 = vrot.slane %v855, 1
        %v908 = vrot.slane %v856, 1
        %v909 = vsel %vm611, %v907, %v908
        %v910 = vrot.slane %v857, 1
        %v911 = vsel %vm611, %v908, %v910
        %v912 = vrot.slane %v858, 1
        %v913 = vrot.slane %v859, 1
        %v914 = vsel %vm611, %v912, %v913
        %v915 = vrot.slane %v860, 1
        %v916 = vsel %vm611, %v913, %v915
        %v917 = vrot.slane %v861, 1
        %v918 = vrot.slane %v862, 1
        %v919 = vsel %vm611, %v917, %v918
        %v920 = vrot.slane %v863, 1
        %v921 = vsel %vm611, %v918, %v920
        %v922 = vrot.slane %v864, 1
        %v923 = vrot.slane %v865, 1
        %v924 = vsel %vm611, %v922, %v923
        %v925 = vrot.slane %v866, 1
        %v926 = vsel %vm611, %v923, %v925
        %v927 = vrot.slane %v867, 1
        %v928 = vrot.slane %v868, 1
        %v929 = vsel %vm611, %v927, %v928
        %v930 = vrot.slane %v869, 1
        %v931 = vsel %vm611, %v928, %v930
        %v932 = vrot.slane %v870, 1
        %v933 = vrot.slane %v871, 1
        %v934 = vsel %vm611, %v932, %v933
        %v935 = vrot.slane %v872, 1
        %v936 = vsel %vm611, %v933, %v935
        %v953 = vadd.f32 %v829, %v899
        %v954 = vadd.f32 %v830, %v901
        %v955 = vadd.f32 %v831, %v904
        %v956 = vadd.f32 %v832, %v906
        %v957 = vadd.f32 %v833, %v909
        %v958 = vadd.f32 %v834, %v911
        %v959 = vadd.f32 %v835, %v914
        %v960 = vadd.f32 %v836, %v916
        %v961 = vadd.f32 %v837, %v919
        %v962 = vadd.f32 %v838, %v921
        %v963 = vadd.f32 %v839, %v924
        %v964 = vadd.f32 %v840, %v926
        %v965 = vadd.f32 %v841, %v929
        %v966 = vadd.f32 %v842, %v931
        %v967 = vadd.f32 %v843, %v934
        %v968 = vadd.f32 %v844, %v936
        %v969 = vlaneseq
        %v970 = vshrl.u32 %v969, 7
        %v971 = vsub.s32 2, %v970
        %v972 = vrot.slane %v521, %v971
        %v973 = vmul.f32 %v493, %v972
        %v974 = vmul.f32 %v494, %v972
        %v975 = vmul.f32 %v495, %v972
        %v976 = vmul.f32 %v496, %v972
        %v977 = vmul.f32 %v497, %v972
        %v978 = vmul.f32 %v498, %v972
        %v979 = vmul.f32 %v499, %v972
        %v980 = vmul.f32 %v500, %v972
        %v981 = vmul.f32 %v501, %v972
        %v982 = vmul.f32 %v502, %v972
        %v983 = vmul.f32 %v503, %v972
        %v984 = vmul.f32 %v504, %v972
        %v985 = vmul.f32 %v505, %v972
        %v986 = vmul.f32 %v506, %v972
        %v987 = vmul.f32 %v507, %v972
        %v988 = vmul.f32 %v508, %v972
        %v989 = vmul.f32 %v509, %v972
        %v990 = vmul.f32 %v510, %v972
        %v991 = vmul.f32 %v511, %v972
        %v992 = vmul.f32 %v512, %v972
        %v993 = vmul.f32 %v513, %v972
        %v994 = vmul.f32 %v514, %v972
        %v995 = vmul.f32 %v515, %v972
        %v996 = vmul.f32 %v516, %v972
        %v1021 = vrot.slane %v973, 2
        %v1022 = vrot.slane %v974, 2
        %v1023 = vsel %vm736, %v1021, %v1022
        %v1024 = vrot.slane %v975, 2
        %v1025 = vsel %vm736, %v1022, %v1024
        %v1026 = vrot.slane %v976, 2
        %v1027 = vrot.slane %v977, 2
        %v1028 = vsel %vm736, %v1026, %v1027
        %v1029 = vrot.slane %v978, 2
        %v1030 = vsel %vm736, %v1027, %v1029
        %v1031 = vrot.slane %v979, 2
        %v1032 = vrot.slane %v980, 2
        %v1033 = vsel %vm736, %v1031, %v1032
        %v1034 = vrot.slane %v981, 2
        %v1035 = vsel %vm736, %v1032, %v1034
        %v1036 = vrot.slane %v982, 2
        %v1037 = vrot.slane %v983, 2
        %v1038 = vsel %vm736, %v1036, %v1037
        %v1039 = vrot.slane %v984, 2
        %v1040 = vsel %vm736, %v1037, %v1039
        %v1041 = vrot.slane %v985, 2
        %v1042 = vrot.slane %v986, 2
        %v1043 = vsel %vm736, %v1041, %v1042
        %v1044 = vrot.slane %v987, 2
        %v1045 = vsel %vm736, %v1042, %v1044
        %v1046 = vrot.slane %v988, 2
        %v1047 = vrot.slane %v989, 2
        %v1048 = vsel %vm736, %v1046, %v1047
        %v1049 = vrot.slane %v990, 2
        %v1050 = vsel %vm736, %v1047, %v1049
        %v1051 = vrot.slane %v991, 2
        %v1052 = vrot.slane %v992, 2
        %v1053 = vsel %vm736, %v1051, %v1052
        %v1054 = vrot.slane %v993, 2
        %v1055 = vsel %vm736, %v1052, %v1054
        %v1056 = vrot.slane %v994, 2
        %v1057 = vrot.slane %v995, 2
        %v1058 = vsel %vm736, %v1056, %v1057
        %v1059 = vrot.slane %v996, 2
        %v1060 = vsel %vm736, %v1057, %v1059
        %v1077 = vadd.f32 %v953, %v1023
        %v1078 = vadd.f32 %v954, %v1025
        %v1079 = vadd.f32 %v955, %v1028
        %v1080 = vadd.f32 %v956, %v1030
        %v1081 = vadd.f32 %v957, %v1033
        %v1082 = vadd.f32 %v958, %v1035
        %v1083 = vadd.f32 %v959, %v1038
        %v1084 = vadd.f32 %v960, %v1040
        %v1085 = vadd.f32 %v961, %v1043
        %v1086 = vadd.f32 %v962, %v1045
        %v1087 = vadd.f32 %v963, %v1048
        %v1088 = vadd.f32 %v964, %v1050
        %v1089 = vadd.f32 %v965, %v1053
        %v1090 = vadd.f32 %v966, %v1055
        %v1091 = vadd.f32 %v967, %v1058
        %v1092 = vadd.f32 %v968, %v1060
        %v1093 = vlaneseq
        %v1094 = vshrl.u32 %v1093, 7
        %v1095 = vsub.s32 0, %v1094
        %v1096 = vrot.slane %v522, %v1095
        %v1097 = vmul.f32 %v496, %v1096
        %v1098 = vmul.f32 %v497, %v1096
        %v1099 = vmul.f32 %v499, %v1096
        %v1100 = vmul.f32 %v500, %v1096
        %v1101 = vmul.f32 %v502, %v1096
        %v1102 = vmul.f32 %v503, %v1096
        %v1103 = vmul.f32 %v505, %v1096
        %v1104 = vmul.f32 %v506, %v1096
        %v1105 = vmul.f32 %v508, %v1096
        %v1106 = vmul.f32 %v509, %v1096
        %v1107 = vmul.f32 %v511, %v1096
        %v1108 = vmul.f32 %v512, %v1096
        %v1109 = vmul.f32 %v514, %v1096
        %v1110 = vmul.f32 %v515, %v1096
        %v1111 = vmul.f32 %v517, %v1096
        %v1112 = vmul.f32 %v518, %v1096
        %v1113 = vadd.f32 %v1077, %v1097
        %v1114 = vadd.f32 %v1078, %v1098
        %v1115 = vadd.f32 %v1079, %v1099
        %v1116 = vadd.f32 %v1080, %v1100
        %v1117 = vadd.f32 %v1081, %v1101
        %v1118 = vadd.f32 %v1082, %v1102
        %v1119 = vadd.f32 %v1083, %v1103
        %v1120 = vadd.f32 %v1084, %v1104
        %v1121 = vadd.f32 %v1085, %v1105
        %v1122 = vadd.f32 %v1086, %v1106
        %v1123 = vadd.f32 %v1087, %v1107
        %v1124 = vadd.f32 %v1088, %v1108
        %v1125 = vadd.f32 %v1089, %v1109
        %v1126 = vadd.f32 %v1090, %v1110
        %v1127 = vadd.f32 %v1091, %v1111
        %v1128 = vadd.f32 %v1092, %v1112
        %v1129 = vlaneseq
        %v1130 = vshrl.u32 %v1129, 7
        %v1131 = vsub.s32 1, %v1130
        %v1132 = vrot.slane %v522, %v1131
        %v1133 = vmul.f32 %v496, %v1132
        %v1134 = vmul.f32 %v497, %v1132
        %v1135 = vmul.f32 %v498, %v1132
        %v1136 = vmul.f32 %v499, %v1132
        %v1137 = vmul.f32 %v500, %v1132
        %v1138 = vmul.f32 %v501, %v1132
        %v1139 = vmul.f32 %v502, %v1132
        %v1140 = vmul.f32 %v503, %v1132
        %v1141 = vmul.f32 %v504, %v1132
        %v1142 = vmul.f32 %v505, %v1132
        %v1143 = vmul.f32 %v506, %v1132
        %v1144 = vmul.f32 %v507, %v1132
        %v1145 = vmul.f32 %v508, %v1132
        %v1146 = vmul.f32 %v509, %v1132
        %v1147 = vmul.f32 %v510, %v1132
        %v1148 = vmul.f32 %v511, %v1132
        %v1149 = vmul.f32 %v512, %v1132
        %v1150 = vmul.f32 %v513, %v1132
        %v1151 = vmul.f32 %v514, %v1132
        %v1152 = vmul.f32 %v515, %v1132
        %v1153 = vmul.f32 %v516, %v1132
        %v1154 = vmul.f32 %v517, %v1132
        %v1155 = vmul.f32 %v518, %v1132
        %v1156 = vmul.f32 %v519, %v1132
        %v1181 = vrot.slane %v1133, 1
        %v1182 = vrot.slane %v1134, 1
        %v1183 = vsel %vm611, %v1181, %v1182
        %v1184 = vrot.slane %v1135, 1
        %v1185 = vsel %vm611, %v1182, %v1184
        %v1186 = vrot.slane %v1136, 1
        %v1187 = vrot.slane %v1137, 1
        %v1188 = vsel %vm611, %v1186, %v1187
        %v1189 = vrot.slane %v1138, 1
        %v1190 = vsel %vm611, %v1187, %v1189
        %v1191 = vrot.slane %v1139, 1
        %v1192 = vrot.slane %v1140, 1
        %v1193 = vsel %vm611, %v1191, %v1192
        %v1194 = vrot.slane %v1141, 1
        %v1195 = vsel %vm611, %v1192, %v1194
        %v1196 = vrot.slane %v1142, 1
        %v1197 = vrot.slane %v1143, 1
        %v1198 = vsel %vm611, %v1196, %v1197
        %v1199 = vrot.slane %v1144, 1
        %v1200 = vsel %vm611, %v1197, %v1199
        %v1201 = vrot.slane %v1145, 1
        %v1202 = vrot.slane %v1146, 1
        %v1203 = vsel %vm611, %v1201, %v1202
        %v1204 = vrot.slane %v1147, 1
        %v1205 = vsel %vm611, %v1202, %v1204
        %v1206 = vrot.slane %v1148, 1
        %v1207 = vrot.slane %v1149, 1
        %v1208 = vsel %vm611, %v1206, %v1207
        %v1209 = vrot.slane %v1150, 1
        %v1210 = vsel %vm611, %v1207, %v1209
        %v1211 = vrot.slane %v1151, 1
        %v1212 = vrot.slane %v1152, 1
        %v1213 = vsel %vm611, %v1211, %v1212
        %v1214 = vrot.slane %v1153, 1
        %v1215 = vsel %vm611, %v1212, %v1214
        %v1216 = vrot.slane %v1154, 1
        %v1217 = vrot.slane %v1155, 1
        %v1218 = vsel %vm611, %v1216, %v1217
        %v1219 = vrot.slane %v1156, 1
        %v1220 = vsel %vm611, %v1217, %v1219
        %v1237 = vadd.f32 %v1113, %v1183
        %v1238 = vadd.f32 %v1114, %v1185
        %v1239 = vadd.f32 %v1115, %v1188
        %v1240 = vadd.f32 %v1116, %v1190
        %v1241 = vadd.f32 %v1117, %v1193
        %v1242 = vadd.f32 %v1118, %v1195
        %v1243 = vadd.f32 %v1119, %v1198
        %v1244 = vadd.f32 %v1120, %v1200
        %v1245 = vadd.f32 %v1121, %v1203
        %v1246 = vadd.f32 %v1122, %v1205
        %v1247 = vadd.f32 %v1123, %v1208
        %v1248 = vadd.f32 %v1124, %v1210
        %v1249 = vadd.f32 %v1125, %v1213
        %v1250 = vadd.f32 %v1126, %v1215
        %v1251 = vadd.f32 %v1127, %v1218
        %v1252 = vadd.f32 %v1128, %v1220
        %v1253 = vlaneseq
        %v1254 = vshrl.u32 %v1253, 7
        %v1255 = vsub.s32 2, %v1254
        %v1256 = vrot.slane %v522, %v1255
        %v1257 = vmul.f32 %v496, %v1256
        %v1258 = vmul.f32 %v497, %v1256
        %v1259 = vmul.f32 %v498, %v1256
        %v1260 = vmul.f32 %v499, %v1256
        %v1261 = vmul.f32 %v500, %v1256
        %v1262 = vmul.f32 %v501, %v1256
        %v1263 = vmul.f32 %v502, %v1256
        %v1264 = vmul.f32 %v503, %v1256
        %v1265 = vmul.f32 %v504, %v1256
        %v1266 = vmul.f32 %v505, %v1256
        %v1267 = vmul.f32 %v506, %v1256
        %v1268 = vmul.f32 %v507, %v1256
        %v1269 = vmul.f32 %v508, %v1256
        %v1270 = vmul.f32 %v509, %v1256
        %v1271 = vmul.f32 %v510, %v1256
        %v1272 = vmul.f32 %v511, %v1256
        %v1273 = vmul.f32 %v512, %v1256
        %v1274 = vmul.f32 %v513, %v1256
        %v1275 = vmul.f32 %v514, %v1256
        %v1276 = vmul.f32 %v515, %v1256
        %v1277 = vmul.f32 %v516, %v1256
        %v1278 = vmul.f32 %v517, %v1256
        %v1279 = vmul.f32 %v518, %v1256
        %v1280 = vmul.f32 %v519, %v1256
        %v1305 = vrot.slane %v1257, 2
        %v1306 = vrot.slane %v1258, 2
        %v1307 = vsel %vm736, %v1305, %v1306
        %v1308 = vrot.slane %v1259, 2
        %v1309 = vsel %vm736, %v1306, %v1308
        %v1310 = vrot.slane %v1260, 2
        %v1311 = vrot.slane %v1261, 2
        %v1312 = vsel %vm736, %v1310, %v1311
        %v1313 = vrot.slane %v1262, 2
        %v1314 = vsel %vm736, %v1311, %v1313
        %v1315 = vrot.slane %v1263, 2
        %v1316 = vrot.slane %v1264, 2
        %v1317 = vsel %vm736, %v1315, %v1316
        %v1318 = vrot.slane %v1265, 2
        %v1319 = vsel %vm736, %v1316, %v1318
        %v1320 = vrot.slane %v1266, 2
        %v1321 = vrot.slane %v1267, 2
        %v1322 = vsel %vm736, %v1320, %v1321
        %v1323 = vrot.slane %v1268, 2
        %v1324 = vsel %vm736, %v1321, %v1323
        %v1325 = vrot.slane %v1269, 2
        %v1326 = vrot.slane %v1270, 2
        %v1327 = vsel %vm736, %v1325, %v1326
        %v1328 = vrot.slane %v1271, 2
        %v1329 = vsel %vm736, %v1326, %v1328
        %v1330 = vrot.slane %v1272, 2
        %v1331 = vrot.slane %v1273, 2
        %v1332 = vsel %vm736, %v1330, %v1331
        %v1333 = vrot.slane %v1274, 2
        %v1334 = vsel %vm736, %v1331, %v1333
        %v1335 = vrot.slane %v1275, 2
        %v1336 = vrot.slane %v1276, 2
        %v1337 = vsel %vm736, %v1335, %v1336
        %v1338 = vrot.slane %v1277, 2
        %v1339 = vsel %vm736, %v1336, %v1338
        %v1340 = vrot.slane %v1278, 2
        %v1341 = vrot.slane %v1279, 2
        %v1342 = vsel %vm736, %v1340, %v1341
        %v1343 = vrot.slane %v1280, 2
        %v1344 = vsel %vm736, %v1341, %v1343
        %v1361 = vadd.f32 %v1237, %v1307
        %v1362 = vadd.f32 %v1238, %v1309
        %v1363 = vadd.f32 %v1239, %v1312
        %v1364 = vadd.f32 %v1240, %v1314
        %v1365 = vadd.f32 %v1241, %v1317
        %v1366 = vadd.f32 %v1242, %v1319
        %v1367 = vadd.f32 %v1243, %v1322
        %v1368 = vadd.f32 %v1244, %v1324
        %v1369 = vadd.f32 %v1245, %v1327
        %v1370 = vadd.f32 %v1246, %v1329
        %v1371 = vadd.f32 %v1247, %v1332
        %v1372 = vadd.f32 %v1248, %v1334
        %v1373 = vadd.f32 %v1249, %v1337
        %v1374 = vadd.f32 %v1250, %v1339
        %v1375 = vadd.f32 %v1251, %v1342
        %v1376 = vadd.f32 %v1252, %v1344
        %v1377 = vld [vmem:[%s2] sm:$0x1]
        %v1379 = vlaneseq
        %v1380 = vshrl.u32 %v1379, 7
        %v1381 = vsub.s32 0, %v1380
        %v1382 = vrot.slane %v1377, %v1381
        %v1384 = vadd.f32 %v1361, %v1382
        %v1385 = vadd.f32 %v1362, %v1382
        %v1386 = vadd.f32 %v1363, %v1382
        %v1387 = vadd.f32 %v1364, %v1382
        %v1388 = vadd.f32 %v1365, %v1382
        %v1389 = vadd.f32 %v1366, %v1382
        %v1390 = vadd.f32 %v1367, %v1382
        %v1391 = vadd.f32 %v1368, %v1382
        %v1392 = vadd.f32 %v1369, %v1382
        %v1393 = vadd.f32 %v1370, %v1382
        %v1394 = vadd.f32 %v1371, %v1382
        %v1395 = vadd.f32 %v1372, %v1382
        %v1396 = vadd.f32 %v1373, %v1382
        %v1397 = vadd.f32 %v1374, %v1382
        %v1398 = vadd.f32 %v1375, %v1382
        %v1399 = vadd.f32 %v1376, %v1382
        %v1400 = vmax.f32 %v1384, 0.0
        %v1401 = vmax.f32 %v1385, 0.0
        %v1402 = vmax.f32 %v1386, 0.0
        %v1403 = vmax.f32 %v1387, 0.0
        %v1404 = vmax.f32 %v1388, 0.0
        %v1405 = vmax.f32 %v1389, 0.0
        %v1406 = vmax.f32 %v1390, 0.0
        %v1407 = vmax.f32 %v1391, 0.0
        %v1408 = vmax.f32 %v1392, 0.0
        %v1409 = vmax.f32 %v1393, 0.0
        %v1410 = vmax.f32 %v1394, 0.0
        %v1411 = vmax.f32 %v1395, 0.0
        %v1412 = vmax.f32 %v1396, 0.0
        %v1413 = vmax.f32 %v1397, 0.0
        %v1414 = vmax.f32 %v1398, 0.0
        %v1415 = vmax.f32 %v1399, 0.0
        %v1416 = vpack.c.bf16 %v1401, %v1400
        %v1417 = vpack.c.bf16 %v1403, %v1402
        %v1418 = vpack.c.bf16 %v1405, %v1404
        %v1419 = vpack.c.bf16 %v1407, %v1406
        %v1420 = vpack.c.bf16 %v1409, %v1408
        %v1421 = vpack.c.bf16 %v1411, %v1410
        %v1422 = vpack.c.bf16 %v1413, %v1412
        %v1423 = vpack.c.bf16 %v1415, %v1414
        %v1424 = vld [vmem:[%s3] sm:$0xf]
        %v1425 = vld [vmem:[%s3 + $0x4] sm:$0xf]
        %v1426 = vld [vmem:[%s3 + $0x8] sm:$0xf]
        %v1427 = vld [vmem:[%s3 + $0xc] sm:$0xf]
        %v1428 = vld [vmem:[%s3 + $0x10] sm:$0xf]
        %v1429 = vld [vmem:[%s3 + $0x14] sm:$0xf]
        %v1430 = vld [vmem:[%s3 + $0x18] sm:$0xf]
        %v1431 = vld [vmem:[%s3 + $0x1c] sm:$0xf]
        %v1432 = vld [vmem:[%s3 + $0x20] sm:$0xf]
        %v1433 = vld [vmem:[%s3 + $0x24] sm:$0xf]
        %v1434 = vld [vmem:[%s3 + $0x28] sm:$0xf]
        %v1435 = vld [vmem:[%s3 + $0x2c] sm:$0xf]
        %v1436 = vld [vmem:[%s3 + $0x30] sm:$0xf]
        %v1437 = vld [vmem:[%s3 + $0x34] sm:$0xf]
        %v1438 = vld [vmem:[%s3 + $0x38] sm:$0xf]
        %v1439 = vld [vmem:[%s3 + $0x3c] sm:$0xf]
        %v1440 = vld [vmem:[%s4] sm:$0x1]
        %v1442 = vlaneseq
        %v1443 = vshrl.u32 %v1442, 7
        %v1444 = vsub.s32 0, %v1443
        %v1445 = vrot.slane %v1440, %v1444
        %v1463 = vunpack.c.l.b16 %v1424
        %v1464 = vunpack.c.l.b16 %v1425
        %v1465 = vunpack.c.l.b16 %v1426
        %v1466 = vunpack.c.l.b16 %v1427
        %v1467 = vunpack.c.l.b16 %v1428
        %v1468 = vunpack.c.l.b16 %v1429
        %v1469 = vunpack.c.l.b16 %v1430
        %v1470 = vunpack.c.l.b16 %v1431
        %v1471 = vunpack.c.l.b16 %v1432
        %v1472 = vunpack.c.l.b16 %v1433
        %v1473 = vunpack.c.l.b16 %v1434
        %v1474 = vunpack.c.l.b16 %v1435
        %v1475 = vunpack.c.l.b16 %v1436
        %v1476 = vunpack.c.l.b16 %v1437
        %v1477 = vunpack.c.l.b16 %v1438
        %v1478 = vunpack.c.l.b16 %v1439
        %v1479 = vpack.c.b16 %v1464, %v1463
        %v1480 = vpack.c.b16 %v1466, %v1465
        %v1481 = vpack.c.b16 %v1468, %v1467
        %v1482 = vpack.c.b16 %v1470, %v1469
        %v1483 = vpack.c.b16 %v1472, %v1471
        %v1484 = vpack.c.b16 %v1474, %v1473
        %v1485 = vpack.c.b16 %v1476, %v1475
        %v1486 = vpack.c.b16 %v1478, %v1477
        %1495 = vmatprep.subr.bf16.mxu0 0
        %1496 = vmatpush1.bf16.msra.mxu0 %v1479
        %1497 = vmatprep.subr.bf16.mxu0 0
        %1498 = vmatpush1.bf16.msra.mxu0 %v1480
        %1499 = vmatprep.subr.bf16.mxu0 0
        %1500 = vmatpush1.bf16.msra.mxu0 %v1481
        %1501 = vmatprep.subr.bf16.mxu0 0
        %1502 = vmatpush1.bf16.msra.mxu0 %v1482
        %1503 = vmatprep.subr.bf16.mxu0 0
        %1504 = vmatpush1.bf16.msra.mxu0 %v1483
        %1505 = vmatprep.subr.bf16.mxu0 0
        %1506 = vmatpush1.bf16.msra.mxu0 %v1484
        %1507 = vmatprep.subr.bf16.mxu0 0
        %1508 = vmatpush1.bf16.msra.mxu0 %v1485
        %1509 = vmatprep.subr.bf16.mxu0 0
        %1510 = vmatpush1.bf16.msra.mxu0 %v1486
        %1511 = vmatprep.subr.bf16.mxu0 0
        %1512 = vmatpush1.bf16.msra.mxu0 0
        %1513 = vmatprep.subr.bf16.mxu0 0
        %1514 = vmatpush1.bf16.msra.mxu0 0
        %1515 = vmatprep.subr.bf16.mxu0 0
        %1516 = vmatpush1.bf16.msra.mxu0 0
        %1517 = vmatprep.subr.bf16.mxu0 0
        %1518 = vmatpush1.bf16.msra.mxu0 0
        %1519 = vmatprep.subr.bf16.mxu0 0
        %1520 = vmatpush1.bf16.msra.mxu0 0
        %1521 = vmatprep.subr.bf16.mxu0 0
        %1522 = vmatpush1.bf16.msra.mxu0 0
        %1523 = vmatprep.subr.bf16.mxu0 0
        %1524 = vmatpush1.bf16.msra.mxu0 0
        %1525 = vmatprep.subr.bf16.mxu0 0
        %1526 = vmatpush1.bf16.msra.mxu0 0
        %1527 = vmatprep.mubr.bf16.mxu0 0
        %1528 = vmatmul.mubr.bf16.gmra.mrb[0].mxu0 %v1416
        %v1529 = vpop.f32.mrb[0].mxu0
        %v1530 = vadd.f32 %v1445, %v1529
        %v1531 = vpop.f32.mrb[0].mxu0
        %v1532 = vpop.f32.mrb[0].mxu0
        %v1533 = vadd.f32 %v1445, %v1532
        %v1534 = vpop.f32.mrb[0].mxu0
        %1535 = vmatprep.mubr.bf16.mxu0 0
        %1536 = vmatmul.mubr.bf16.gmra.mrb[0].mxu0 %v1417
        %v1537 = vpop.f32.mrb[0].mxu0
        %v1538 = vadd.f32 %v1445, %v1537
        %v1539 = vpop.f32.mrb[0].mxu0
        %v1540 = vpop.f32.mrb[0].mxu0
        %v1541 = vadd.f32 %v1445, %v1540
        %v1542 = vpop.f32.mrb[0].mxu0
        %1543 = vmatprep.mubr.bf16.mxu0 0
        %1544 = vmatmul.mubr.bf16.gmra.mrb[0].mxu0 %v1418
        %v1545 = vpop.f32.mrb[0].mxu0
        %v1546 = vadd.f32 %v1445, %v1545
        %v1547 = vpop.f32.mrb[0].mxu0
        %v1548 = vpop.f32.mrb[0].mxu0
        %v1549 = vadd.f32 %v1445, %v1548
        %v1550 = vpop.f32.mrb[0].mxu0
        %1551 = vmatprep.mubr.bf16.mxu0 0
        %1552 = vmatmul.mubr.bf16.gmra.mrb[0].mxu0 %v1419
        %v1553 = vpop.f32.mrb[0].mxu0
        %v1554 = vadd.f32 %v1445, %v1553
        %v1555 = vpop.f32.mrb[0].mxu0
        %v1556 = vpop.f32.mrb[0].mxu0
        %v1557 = vadd.f32 %v1445, %v1556
        %v1558 = vpop.f32.mrb[0].mxu0
        %1559 = vmatprep.mubr.bf16.mxu0 0
        %1560 = vmatmul.mubr.bf16.gmra.mrb[0].mxu0 %v1420
        %v1561 = vpop.f32.mrb[0].mxu0
        %v1562 = vadd.f32 %v1445, %v1561
        %v1563 = vpop.f32.mrb[0].mxu0
        %v1564 = vpop.f32.mrb[0].mxu0
        %v1565 = vadd.f32 %v1445, %v1564
        %v1566 = vpop.f32.mrb[0].mxu0
        %1567 = vmatprep.mubr.bf16.mxu0 0
        %1568 = vmatmul.mubr.bf16.gmra.mrb[0].mxu0 %v1421
        %v1569 = vpop.f32.mrb[0].mxu0
        %v1570 = vadd.f32 %v1445, %v1569
        %v1571 = vpop.f32.mrb[0].mxu0
        %v1572 = vpop.f32.mrb[0].mxu0
        %v1573 = vadd.f32 %v1445, %v1572
        %v1574 = vpop.f32.mrb[0].mxu0
        %1575 = vmatprep.mubr.bf16.mxu0 0
        %1576 = vmatmul.mubr.bf16.gmra.mrb[0].mxu0 %v1422
        %v1577 = vpop.f32.mrb[0].mxu0
        %v1578 = vadd.f32 %v1445, %v1577
        %v1579 = vpop.f32.mrb[0].mxu0
        %v1580 = vpop.f32.mrb[0].mxu0
        %v1581 = vadd.f32 %v1445, %v1580
        %v1582 = vpop.f32.mrb[0].mxu0
        %1583 = vmatprep.mubr.bf16.mxu0 0
        %1584 = vmatmul.mubr.bf16.gmra.mrb[0].mxu0 %v1423
        %v1585 = vpop.f32.mrb[0].mxu0
        %v1586 = vadd.f32 %v1445, %v1585
        %v1587 = vpop.f32.mrb[0].mxu0
        %v1588 = vpop.f32.mrb[0].mxu0
        %v1589 = vadd.f32 %v1445, %v1588
        %v1590 = vpop.f32.mrb[0].mxu0
        %1591 = vdwg.mxu0
        %v1592 = vmax.f32 %v1530, 0.0
        %v1593 = vmax.f32 %v1533, 0.0
        %v1594 = vmax.f32 %v1538, 0.0
        %v1595 = vmax.f32 %v1541, 0.0
        %v1596 = vmax.f32 %v1546, 0.0
        %v1597 = vmax.f32 %v1549, 0.0
        %v1598 = vmax.f32 %v1554, 0.0
        %v1599 = vmax.f32 %v1557, 0.0
        %v1600 = vmax.f32 %v1562, 0.0
        %v1601 = vmax.f32 %v1565, 0.0
        %v1602 = vmax.f32 %v1570, 0.0
        %v1603 = vmax.f32 %v1573, 0.0
        %v1604 = vmax.f32 %v1578, 0.0
        %v1605 = vmax.f32 %v1581, 0.0
        %v1606 = vmax.f32 %v1586, 0.0
        %v1607 = vmax.f32 %v1589, 0.0
        %1608 = vst [vmem:[%s190] sm:$0xff] %v1592
        %1609 = vst [vmem:[%s190 + $0x8] sm:$0xff] %v1593
        %1610 = vst [vmem:[%s190 + $0x10] sm:$0xff] %v1594
        %1611 = vst [vmem:[%s190 + $0x18] sm:$0xff] %v1595
        %1612 = vst [vmem:[%s190 + $0x20] sm:$0xff] %v1596
        %1613 = vst [vmem:[%s190 + $0x28] sm:$0xff] %v1597
        %1614 = vst [vmem:[%s190 + $0x30] sm:$0xff] %v1598
        %1615 = vst [vmem:[%s190 + $0x38] sm:$0xff] %v1599
        %1616 = vst [vmem:[%s190 + $0x40] sm:$0xff] %v1600
        %1617 = vst [vmem:[%s190 + $0x48] sm:$0xff] %v1601
        %1618 = vst [vmem:[%s190 + $0x50] sm:$0xff] %v1602
        %1619 = vst [vmem:[%s190 + $0x58] sm:$0xff] %v1603
        %1620 = vst [vmem:[%s190 + $0x60] sm:$0xff] %v1604
        %1621 = vst [vmem:[%s190 + $0x68] sm:$0xff] %v1605
        %1622 = vst [vmem:[%s190 + $0x70] sm:$0xff] %v1606
        %1623 = vst [vmem:[%s190 + $0x78] sm:$0xff] %v1607
        %s1624 = sand.u32 %s125, 1
        %s1625 = scalar_lea.sflag [#allocation5], %s1624
        %s1626 = sand.u32 %s125, 1
        %s1627 = smul.addr %s1626, 128
        %s1628 = scalar_lea.vmem [#allocation4], %s1627
        // Predicated region
        $region119: #{tpu_custom_call.1} parent=35 // pred_check
          %p1629 = pneg %p135
        $region120: #{tpu_custom_call.1} parent=35 // pred_check_branch
          %1631 = sbr.rel (%p1629) target = $region122
        $region121: #{tpu_custom_call.1} parent=35 // pred_region
          %s1632 = smul.u32 8, %s24
          %s1634 = ssub.s32 2048, 2048
          %1635 = vsyncadd %s1625, %s1634
          %s1636 = smul.addr %s1632, 2
          %s1637 = smul.addr %s23, 32
          %s1638 = sadd.s32 %s1636, %s1637
          %s1639 = smul.addr %s1638, 128
          %s1640 = scalar_lea.hbm %s5, %s1639
          %s1641 = sshll.u32 %s1628, 4
          %s1642 = int_to_ptr.vmem [resolvable:$true] %s1641
          %1647 = dma.vmem_to_hbm [thread:$0]  %s1642, 2048, %s1640, %s1625, 128, 128, 8
        $region122: #{tpu_custom_call.1} parent=35 // pred_fallthru
          _
      $region36: #{tpu_custom_call.1} parent=5 // pred_fallthru
        _
      %p1648 = scmp.le.s32.totalorder 2, %s14
      // Predicated region
      $region123: #{tpu_custom_call.1} parent=5 // pred_check
        %p1649 = pneg %p1648
      $region124: #{tpu_custom_call.1} parent=5 // pred_check_branch
        %1651 = sbr.rel (%p1649) target = $region126
      $region125: #{tpu_custom_call.1} parent=5 // pred_region
        %s1652 = ssub.s32 %s14, 2
        // Predicated region
        $region127: #{tpu_custom_call.1} parent=125 // pred_check
          %p1653 = pneg %p141
        $region128: #{tpu_custom_call.1} parent=125 // pred_check_branch
          %1655 = sbr.rel (%p1653) target = $region130
        $region129: #{tpu_custom_call.1} parent=125 // pred_region
          %s1656 = sand.u32 %s126, 1
          %s1657 = scalar_lea.sflag [#allocation5], %s1656
          %s1658 = sand.u32 %s126, 1
          %s1659 = smul.addr %s1658, 128
          %s1660 = scalar_lea.vmem [#allocation4], %s1659
          %1661 = dma.done %s1657, 2048
        $region130: #{tpu_custom_call.1} parent=125 // pred_fallthru
          _
      $region126: #{tpu_custom_call.1} parent=5 // pred_fallthru
        _
    $region6: #{tpu_custom_call.1} parent=1 // loop_footer
      %s18 = sadd.s32 1, %s14
    $region7: #{tpu_custom_call.1} parent=1 // loop_footer_branch
      %13 = sbr.rel target = $region3
    $region8: #{tpu_custom_call.1} parent=1 // loop_exit
      _
    %1662 = vsyncpa [#allocation5], 1
    %s1663 = scalar_lea.sflag [#allocation5], 1
    %1664 = vsyncpa %s1663, 1
  %1665 = vsyncmov [#allocation3]
  %s1666 = vpop.sfrf %1665
  %p1667 = scmp.eq.s32.totalorder %s1666, 0
  %p1668 = pneg %p1667
  %1670 = shalt.err (%p1668)
  %s1671 = scalar_lea.sflag [#allocation3], 1
  %1672 = vsyncmov %s1671
  %s1673 = vpop.sfrf %1672
  %p1674 = scmp.eq.s32.totalorder %s1673, 0
  %p1675 = pneg %p1674
  %1677 = shalt.err (%p1675)

</llo_original>
